<compile_context>
chip_gen: v6e
topology: v6e:2x2x1
jax: 0.10.0
libtpu: 0.0.40
codegen_flags: <defaults>
</compile_context>

<pallas_src>
import functools

import jax
import jax.numpy as jnp
from jax.experimental import pallas as pl
from jax.experimental.pallas import tpu as pltpu


def make_kernel(num_layers, seq_len, n_batch, hidden):
    L, H, N, T = num_layers, hidden, n_batch, seq_len

    def cell(gates, c):
        # gates: (N, 4H) f32, column order [i, f, o | g], g columns pre-scaled x2.
        s = jax.nn.sigmoid(gates)             # single full-vreg EUP pass
        i_g = s[:, 0:H]
        f_g = s[:, H:2 * H]
        o_g = s[:, 2 * H:3 * H]
        g_g = 2.0 * s[:, 3 * H:] - 1.0        # tanh(z) == 2*sigmoid(2z) - 1 (exact)
        c_new = f_g * c + i_g * g_g
        h_new = o_g * jnp.tanh(c_new)
        return h_new, c_new

    def kernel(x_ref, wih0_ref, b0_ref, wblk_ref, bblk_ref, wh_ref, bh_ref,
               out_ref):
        # Hoisted layer-0 input projection over the whole sequence: one MXU
        # matmul, bias added once (embedding Linear already folded in).
        proj0 = jnp.dot(x_ref[...], wih0_ref[...],
                        preferred_element_type=jnp.float32) + b0_ref[...]  # (T*N, 4H)

        wblk = wblk_ref[...]   # (L*H, L*4H) bf16, block bidiagonal
        bblk = bblk_ref[...]   # (1,   L*4H) f32, block 0 is zero (b0 is in proj0)

        h_bf = [jnp.zeros((N, H), jnp.bfloat16) for _ in range(L)]  # matmul operand
        h_f32 = [jnp.zeros((N, H), jnp.float32) for _ in range(L)]  # head features
        c = [jnp.zeros((N, H), jnp.float32) for _ in range(L)]

        # Time 0, layer 0: h_{0,-1} == 0, gates are just the input projection.
        h0, c[0] = cell(proj0[0:N, :], c[0])
        h_bf[0], h_f32[0] = h0.astype(jnp.bfloat16), h0

        # Wavefront over diagonals, fully unrolled (T, L are small & static).
        # At step t the fused matmul yields layer l's gate pre-activations for
        # time t + 1 - l; every operand it needs was produced at step t - 1.
        for t in range(T + L - 2):
            lhs = jnp.concatenate(h_bf, axis=-1)                    # (N, L*H) bf16
            fused = jnp.dot(lhs, wblk,
                            preferred_element_type=jnp.float32) + bblk  # (N, L*4H)
            for l in range(L):
                tl = t + 1 - l
                if 0 <= tl < T:
                    g = fused[:, l * 4 * H:(l + 1) * 4 * H]
                    if l == 0:
                        g = g + proj0[tl * N:(tl + 1) * N, :]
                    hl, c[l] = cell(g, c[l])
                    h_bf[l], h_f32[l] = hl.astype(jnp.bfloat16), hl

        # Head: concat per-layer final hidden states (layer-major, matching the
        # module's h_osl reshape); 1-wide linear as VPU multiply + lane reduce.
        feat = jnp.concatenate(h_f32, axis=-1)                      # (N, L*H) f32
        logits = jnp.sum(feat * wh_ref[...], axis=-1, keepdims=True) + bh_ref[...]
        out_ref[...] = jax.nn.sigmoid(logits)

    return kernel


def _prep_gates(w, H):
    """PyTorch gate order [i, f, g, o] -> kernel order [i, f, o | g];
    g columns pre-scaled by 2 for the tanh-via-sigmoid identity."""
    return jnp.concatenate(
        [w[..., 0:H], w[..., H:2 * H], w[..., 3 * H:4 * H], 2.0 * w[..., 2 * H:3 * H]],
        axis=-1,
    )


def fall_detection_forward(x_nsd, params, *, num_layers, embed_size, hidden):
    """x_nsd: (N, seq, motion_dim) float32. Returns (N, 1) sigmoid outputs."""
    del embed_size  # folded into layer-0 weights below
    N, seq, D = x_nsd.shape
    H, L = hidden, num_layers

    # Time-major rows: row t*N + n == sample n at time t (matches the permute).
    x_tm = jnp.transpose(x_nsd, (1, 0, 2)).reshape(seq * N, D)

    # ---- param prep: gate permutation + x2 g-scale, embedding fold, bf16 ----
    wih0_p = _prep_gates(params["wih0"], H)
    b0_p = _prep_gates(params["b0"], H)
    wih0_fused = params["we"] @ wih0_p              # (D, 4H)
    b0_fused = params["be"] @ wih0_p + b0_p         # (1, 4H)

    # Block-bidiagonal weight for the fused per-diagonal recurrent matmul:
    #   row block r, col block r     -> Whh_r
    #   row block r, col block r + 1 -> Wih_{r+1}
    rows = []
    for r in range(L):
        row = []
        for col in range(L):
            if col == r:
                row.append(_prep_gates(params[f"whh{r}"], H))
            elif col == r + 1:
                row.append(_prep_gates(params[f"wih{col}"], H))
            else:
                row.append(jnp.zeros((H, 4 * H), jnp.float32))
        rows.append(jnp.concatenate(row, axis=-1))
    wblk = jnp.concatenate(rows, axis=0)                       # (L*H, L*4H)

    bblk = jnp.concatenate(
        [jnp.zeros((1, 4 * H), jnp.float32)]                   # layer-0 bias is in proj0
        + [_prep_gates(params[f"b{l}"], H) for l in range(1, L)],
        axis=-1,
    )                                                          # (1, L*4H)

    inputs = [
        x_tm.astype(jnp.bfloat16),
        wih0_fused.astype(jnp.bfloat16),
        b0_fused.astype(jnp.float32),
        wblk.astype(jnp.bfloat16),
        bblk.astype(jnp.float32),
        params["wh"].reshape(1, L * H).astype(jnp.float32),    # head as a row
        params["bh"].astype(jnp.float32),
    ]

    vmem = pl.BlockSpec(memory_space=pltpu.MemorySpace.VMEM)
    kernel = make_kernel(L, seq, N, H)
    return pl.pallas_call(
        kernel,
        out_shape=jax.ShapeDtypeStruct((N, 1), jnp.float32),
        in_specs=[vmem] * len(inputs),
        out_specs=vmem,
    )(*inputs)


def reference_forward(x_nsd, params, *, num_layers, embed_size, hidden):
    """Pure-JAX fp32 reference replicating PyTorch semantics (gate order i,f,g,o)."""
    N, seq, D = x_nsd.shape
    H = hidden
    x = jnp.transpose(x_nsd, (1, 0, 2)).astype(jnp.float32)
    emb = jnp.einsum("snd,de->sne", x, params["we"]) + params["be"]
    layer_in = emb
    h_finals = []
    for l in range(num_layers):
        wih, whh, b = params[f"wih{l}"], params[f"whh{l}"], params[f"b{l}"]
        h = jnp.zeros((N, H), jnp.float32)
        c = jnp.zeros((N, H), jnp.float32)
        outs = []
        for t in range(seq):
            gates = layer_in[t] @ wih + h @ whh + b
            i_g = jax.nn.sigmoid(gates[:, 0 * H:1 * H])
            f_g = jax.nn.sigmoid(gates[:, 1 * H:2 * H])
            g_g = jnp.tanh(gates[:, 2 * H:3 * H])
            o_g = jax.nn.sigmoid(gates[:, 3 * H:4 * H])
            c = f_g * c + i_g * g_g
            h = o_g * jnp.tanh(c)
            outs.append(h)
        layer_in = jnp.stack(outs, axis=0)
        h_finals.append(h)
    feat = jnp.concatenate(h_finals, axis=-1)
    return jax.nn.sigmoid(feat @ params["wh"] + params["bh"])


def init_params(key, motion_dim, embed_size, hidden, num_layers):
    scale = 0.1
    ks = jax.random.split(key, 4 + 4 * num_layers)
    params = {
        "we": scale * jax.random.normal(ks[0], (motion_dim, embed_size), jnp.float32),
        "be": scale * jax.random.normal(ks[1], (1, embed_size), jnp.float32),
        "wh": scale * jax.random.normal(ks[2], (num_layers * hidden, 1), jnp.float32),
        "bh": scale * jax.random.normal(ks[3], (1, 1), jnp.float32),
    }
    idx = 4
    for l in range(num_layers):
        in_dim = embed_size if l == 0 else hidden
        wih = scale * jax.random.normal(ks[idx + 0], (in_dim, 4 * hidden), jnp.float32)
        whh = scale * jax.random.normal(ks[idx + 1], (hidden, 4 * hidden), jnp.float32)
        b_ih = scale * jax.random.normal(ks[idx + 2], (1, 4 * hidden), jnp.float32)
        b_hh = scale * jax.random.normal(ks[idx + 3], (1, 4 * hidden), jnp.float32)
        params[f"wih{l}"] = wih
        params[f"whh{l}"] = whh
        params[f"b{l}"] = b_ih + b_hh  # PyTorch adds both biases
        idx += 4
    return params


if __name__ == "__main__":
    # Small shapes consistent with the module's forward.
    N, seq, motion_dim = 8, 8, 4
    embed_size, hidden, num_layers = 32, 32, 2

    key = jax.random.PRNGKey(0)
    k_x, k_p = jax.random.split(key)
    x = jax.random.normal(k_x, (N, seq, motion_dim), jnp.float32)
    params = init_params(k_p, motion_dim, embed_size, hidden, num_layers)

    fwd = functools.partial(
        fall_detection_forward, num_layers=num_layers, embed_size=embed_size, hidden=hidden
    )
    out = jax.block_until_ready(fwd(x, params))

    ref = reference_forward(
        x, params, num_layers=num_layers, embed_size=embed_size, hidden=hidden
    )
    assert out.shape == (N, 1)
    # bf16 matmul operands / bf16 hidden-state shadow vs fp32 reference.
    assert jnp.allclose(out, ref, atol=1e-2, rtol=1e-2), (out, ref)
    print("KERNEL_OK")
</pallas_src>

<mosaic_0001>
module attributes {stable_mosaic.version = 11 : i64} {
  func.func @kernel(%arg0: memref<64x4xbf16, #tpu.memory_space<vmem>>, %arg1: memref<4x128xbf16, #tpu.memory_space<vmem>>, %arg2: memref<1x128xf32, #tpu.memory_space<vmem>>, %arg3: memref<64x256xbf16, #tpu.memory_space<vmem>>, %arg4: memref<1x256xf32, #tpu.memory_space<vmem>>, %arg5: memref<1x64xf32, #tpu.memory_space<vmem>>, %arg6: memref<1x1xf32, #tpu.memory_space<vmem>>, %arg7: memref<8x1xf32, #tpu.memory_space<vmem>>) attributes {dimension_semantics = [], scalar_prefetch = 0 : i64, scratch_operands = 0 : i64, tpu.core_type = #tpu.core_type<tc>} {
    %c0 = arith.constant 0 : index
    %c0_0 = arith.constant 0 : index
    %0 = vector.load %arg0[%c0, %c0_0] : memref<64x4xbf16, #tpu.memory_space<vmem>>, vector<64x4xbf16>
    %c0_1 = arith.constant 0 : index
    %c0_2 = arith.constant 0 : index
    %1 = vector.load %arg1[%c0_1, %c0_2] : memref<4x128xbf16, #tpu.memory_space<vmem>>, vector<4x128xbf16>
    %cst = arith.constant dense<0.000000e+00> : vector<64x128xf32>
    %2 = tpu.matmul %0, %1, %cst {dimension_numbers = #tpu.dot_dimension_numbers<[1], [0], [0], [1], [0, 0, 1, 1], [], []>} : vector<64x4xbf16>, vector<4x128xbf16>, vector<64x128xf32> -> vector<64x128xf32>
    %c0_3 = arith.constant 0 : index
    %c0_4 = arith.constant 0 : index
    %3 = vector.load %arg2[%c0_3, %c0_4] : memref<1x128xf32, #tpu.memory_space<vmem>>, vector<1x128xf32>
    %4 = vector.broadcast %3 : vector<1x128xf32> to vector<64x128xf32>
    %5 = arith.addf %2, %4 : vector<64x128xf32>
    %c0_5 = arith.constant 0 : index
    %c0_6 = arith.constant 0 : index
    %6 = vector.load %arg3[%c0_5, %c0_6] : memref<64x256xbf16, #tpu.memory_space<vmem>>, vector<64x256xbf16>
    %c0_7 = arith.constant 0 : index
    %c0_8 = arith.constant 0 : index
    %7 = vector.load %arg4[%c0_7, %c0_8] : memref<1x256xf32, #tpu.memory_space<vmem>>, vector<1x256xf32>
    %cst_9 = arith.constant 0.000000e+00 : bf16
    %8 = vector.broadcast %cst_9 : bf16 to vector<8x32xbf16>
    %cst_10 = arith.constant 0.000000e+00 : f32
    %9 = vector.broadcast %cst_10 : f32 to vector<8x32xf32>
    %cst_11 = arith.constant 0.000000e+00 : f32
    %10 = vector.broadcast %cst_11 : f32 to vector<8x32xf32>
    %11 = vector.extract_strided_slice %5 {offsets = [0, 0], sizes = [8, 128], strides = [1, 1]} : vector<64x128xf32> to vector<8x128xf32>
    %12 = arith.negf %11 : vector<8x128xf32>
    %13 = math.exp %12 : vector<8x128xf32>
    %cst_12 = arith.constant 1.000000e+00 : f32
    %14 = vector.broadcast %cst_12 : f32 to vector<8x128xf32>
    %15 = arith.addf %14, %13 : vector<8x128xf32>
    %16 = arith.divf %14, %15 : vector<8x128xf32>
    %17 = vector.extract_strided_slice %16 {offsets = [0, 0], sizes = [8, 32], strides = [1, 1]} : vector<8x128xf32> to vector<8x32xf32>
    %18 = vector.extract_strided_slice %16 {offsets = [0, 32], sizes = [8, 32], strides = [1, 1]} : vector<8x128xf32> to vector<8x32xf32>
    %19 = vector.extract_strided_slice %16 {offsets = [0, 64], sizes = [8, 32], strides = [1, 1]} : vector<8x128xf32> to vector<8x32xf32>
    %20 = vector.extract_strided_slice %16 {offsets = [0, 96], sizes = [8, 32], strides = [1, 1]} : vector<8x128xf32> to vector<8x32xf32>
    %cst_13 = arith.constant 2.000000e+00 : f32
    %21 = vector.broadcast %cst_13 : f32 to vector<8x32xf32>
    %22 = arith.mulf %21, %20 : vector<8x32xf32>
    %cst_14 = arith.constant 1.000000e+00 : f32
    %23 = vector.broadcast %cst_14 : f32 to vector<8x32xf32>
    %24 = arith.subf %22, %23 : vector<8x32xf32>
    %25 = arith.mulf %18, %9 : vector<8x32xf32>
    %26 = arith.mulf %17, %24 : vector<8x32xf32>
    %27 = arith.addf %25, %26 : vector<8x32xf32>
    %28 = math.tanh %27 : vector<8x32xf32>
    %29 = arith.mulf %19, %28 : vector<8x32xf32>
    %30 = arith.truncf %29 : vector<8x32xf32> to vector<8x32xbf16>
    %31 = tpu.concatenate %30, %8 in 1 : vector<8x32xbf16>, vector<8x32xbf16> -> vector<8x64xbf16>
    %cst_15 = arith.constant dense<0.000000e+00> : vector<8x256xf32>
    %32 = tpu.matmul %31, %6, %cst_15 {dimension_numbers = #tpu.dot_dimension_numbers<[1], [0], [0], [1], [0, 0, 1, 1], [], []>} : vector<8x64xbf16>, vector<64x256xbf16>, vector<8x256xf32> -> vector<8x256xf32>
    %33 = vector.broadcast %7 : vector<1x256xf32> to vector<8x256xf32>
    %34 = arith.addf %32, %33 : vector<8x256xf32>
    %35 = vector.extract_strided_slice %34 {offsets = [0, 0], sizes = [8, 128], strides = [1, 1]} : vector<8x256xf32> to vector<8x128xf32>
    %36 = vector.extract_strided_slice %5 {offsets = [8, 0], sizes = [8, 128], strides = [1, 1]} : vector<64x128xf32> to vector<8x128xf32>
    %37 = arith.addf %35, %36 : vector<8x128xf32>
    %38 = arith.negf %37 : vector<8x128xf32>
    %39 = math.exp %38 : vector<8x128xf32>
    %cst_16 = arith.constant 1.000000e+00 : f32
    %40 = vector.broadcast %cst_16 : f32 to vector<8x128xf32>
    %41 = arith.addf %40, %39 : vector<8x128xf32>
    %42 = arith.divf %40, %41 : vector<8x128xf32>
    %43 = vector.extract_strided_slice %42 {offsets = [0, 0], sizes = [8, 32], strides = [1, 1]} : vector<8x128xf32> to vector<8x32xf32>
    %44 = vector.extract_strided_slice %42 {offsets = [0, 32], sizes = [8, 32], strides = [1, 1]} : vector<8x128xf32> to vector<8x32xf32>
    %45 = vector.extract_strided_slice %42 {offsets = [0, 64], sizes = [8, 32], strides = [1, 1]} : vector<8x128xf32> to vector<8x32xf32>
    %46 = vector.extract_strided_slice %42 {offsets = [0, 96], sizes = [8, 32], strides = [1, 1]} : vector<8x128xf32> to vector<8x32xf32>
    %cst_17 = arith.constant 2.000000e+00 : f32
    %47 = vector.broadcast %cst_17 : f32 to vector<8x32xf32>
    %48 = arith.mulf %47, %46 : vector<8x32xf32>
    %cst_18 = arith.constant 1.000000e+00 : f32
    %49 = vector.broadcast %cst_18 : f32 to vector<8x32xf32>
    %50 = arith.subf %48, %49 : vector<8x32xf32>
    %51 = arith.mulf %44, %27 : vector<8x32xf32>
    %52 = arith.mulf %43, %50 : vector<8x32xf32>
    %53 = arith.addf %51, %52 : vector<8x32xf32>
    %54 = math.tanh %53 : vector<8x32xf32>
    %55 = arith.mulf %45, %54 : vector<8x32xf32>
    %56 = arith.truncf %55 : vector<8x32xf32> to vector<8x32xbf16>
    %57 = vector.extract_strided_slice %34 {offsets = [0, 128], sizes = [8, 128], strides = [1, 1]} : vector<8x256xf32> to vector<8x128xf32>
    %58 = arith.negf %57 : vector<8x128xf32>
    %59 = math.exp %58 : vector<8x128xf32>
    %cst_19 = arith.constant 1.000000e+00 : f32
    %60 = vector.broadcast %cst_19 : f32 to vector<8x128xf32>
    %61 = arith.addf %60, %59 : vector<8x128xf32>
    %62 = arith.divf %60, %61 : vector<8x128xf32>
    %63 = vector.extract_strided_slice %62 {offsets = [0, 0], sizes = [8, 32], strides = [1, 1]} : vector<8x128xf32> to vector<8x32xf32>
    %64 = vector.extract_strided_slice %62 {offsets = [0, 32], sizes = [8, 32], strides = [1, 1]} : vector<8x128xf32> to vector<8x32xf32>
    %65 = vector.extract_strided_slice %62 {offsets = [0, 64], sizes = [8, 32], strides = [1, 1]} : vector<8x128xf32> to vector<8x32xf32>
    %66 = vector.extract_strided_slice %62 {offsets = [0, 96], sizes = [8, 32], strides = [1, 1]} : vector<8x128xf32> to vector<8x32xf32>
    %cst_20 = arith.constant 2.000000e+00 : f32
    %67 = vector.broadcast %cst_20 : f32 to vector<8x32xf32>
    %68 = arith.mulf %67, %66 : vector<8x32xf32>
    %cst_21 = arith.constant 1.000000e+00 : f32
    %69 = vector.broadcast %cst_21 : f32 to vector<8x32xf32>
    %70 = arith.subf %68, %69 : vector<8x32xf32>
    %71 = arith.mulf %64, %10 : vector<8x32xf32>
    %72 = arith.mulf %63, %70 : vector<8x32xf32>
    %73 = arith.addf %71, %72 : vector<8x32xf32>
    %74 = math.tanh %73 : vector<8x32xf32>
    %75 = arith.mulf %65, %74 : vector<8x32xf32>
    %76 = arith.truncf %75 : vector<8x32xf32> to vector<8x32xbf16>
    %77 = tpu.concatenate %56, %76 in 1 : vector<8x32xbf16>, vector<8x32xbf16> -> vector<8x64xbf16>
    %cst_22 = arith.constant dense<0.000000e+00> : vector<8x256xf32>
    %78 = tpu.matmul %77, %6, %cst_22 {dimension_numbers = #tpu.dot_dimension_numbers<[1], [0], [0], [1], [0, 0, 1, 1], [], []>} : vector<8x64xbf16>, vector<64x256xbf16>, vector<8x256xf32> -> vector<8x256xf32>
    %79 = vector.broadcast %7 : vector<1x256xf32> to vector<8x256xf32>
    %80 = arith.addf %78, %79 : vector<8x256xf32>
    %81 = vector.extract_strided_slice %80 {offsets = [0, 0], sizes = [8, 128], strides = [1, 1]} : vector<8x256xf32> to vector<8x128xf32>
    %82 = vector.extract_strided_slice %5 {offsets = [16, 0], sizes = [8, 128], strides = [1, 1]} : vector<64x128xf32> to vector<8x128xf32>
    %83 = arith.addf %81, %82 : vector<8x128xf32>
    %84 = arith.negf %83 : vector<8x128xf32>
    %85 = math.exp %84 : vector<8x128xf32>
    %cst_23 = arith.constant 1.000000e+00 : f32
    %86 = vector.broadcast %cst_23 : f32 to vector<8x128xf32>
    %87 = arith.addf %86, %85 : vector<8x128xf32>
    %88 = arith.divf %86, %87 : vector<8x128xf32>
    %89 = vector.extract_strided_slice %88 {offsets = [0, 0], sizes = [8, 32], strides = [1, 1]} : vector<8x128xf32> to vector<8x32xf32>
    %90 = vector.extract_strided_slice %88 {offsets = [0, 32], sizes = [8, 32], strides = [1, 1]} : vector<8x128xf32> to vector<8x32xf32>
    %91 = vector.extract_strided_slice %88 {offsets = [0, 64], sizes = [8, 32], strides = [1, 1]} : vector<8x128xf32> to vector<8x32xf32>
    %92 = vector.extract_strided_slice %88 {offsets = [0, 96], sizes = [8, 32], strides = [1, 1]} : vector<8x128xf32> to vector<8x32xf32>
    %cst_24 = arith.constant 2.000000e+00 : f32
    %93 = vector.broadcast %cst_24 : f32 to vector<8x32xf32>
    %94 = arith.mulf %93, %92 : vector<8x32xf32>
    %cst_25 = arith.constant 1.000000e+00 : f32
    %95 = vector.broadcast %cst_25 : f32 to vector<8x32xf32>
    %96 = arith.subf %94, %95 : vector<8x32xf32>
    %97 = arith.mulf %90, %53 : vector<8x32xf32>
    %98 = arith.mulf %89, %96 : vector<8x32xf32>
    %99 = arith.addf %97, %98 : vector<8x32xf32>
    %100 = math.tanh %99 : vector<8x32xf32>
    %101 = arith.mulf %91, %100 : vector<8x32xf32>
    %102 = arith.truncf %101 : vector<8x32xf32> to vector<8x32xbf16>
    %103 = vector.extract_strided_slice %80 {offsets = [0, 128], sizes = [8, 128], strides = [1, 1]} : vector<8x256xf32> to vector<8x128xf32>
    %104 = arith.negf %103 : vector<8x128xf32>
    %105 = math.exp %104 : vector<8x128xf32>
    %cst_26 = arith.constant 1.000000e+00 : f32
    %106 = vector.broadcast %cst_26 : f32 to vector<8x128xf32>
    %107 = arith.addf %106, %105 : vector<8x128xf32>
    %108 = arith.divf %106, %107 : vector<8x128xf32>
    %109 = vector.extract_strided_slice %108 {offsets = [0, 0], sizes = [8, 32], strides = [1, 1]} : vector<8x128xf32> to vector<8x32xf32>
    %110 = vector.extract_strided_slice %108 {offsets = [0, 32], sizes = [8, 32], strides = [1, 1]} : vector<8x128xf32> to vector<8x32xf32>
    %111 = vector.extract_strided_slice %108 {offsets = [0, 64], sizes = [8, 32], strides = [1, 1]} : vector<8x128xf32> to vector<8x32xf32>
    %112 = vector.extract_strided_slice %108 {offsets = [0, 96], sizes = [8, 32], strides = [1, 1]} : vector<8x128xf32> to vector<8x32xf32>
    %cst_27 = arith.constant 2.000000e+00 : f32
    %113 = vector.broadcast %cst_27 : f32 to vector<8x32xf32>
    %114 = arith.mulf %113, %112 : vector<8x32xf32>
    %cst_28 = arith.constant 1.000000e+00 : f32
    %115 = vector.broadcast %cst_28 : f32 to vector<8x32xf32>
    %116 = arith.subf %114, %115 : vector<8x32xf32>
    %117 = arith.mulf %110, %73 : vector<8x32xf32>
    %118 = arith.mulf %109, %116 : vector<8x32xf32>
    %119 = arith.addf %117, %118 : vector<8x32xf32>
    %120 = math.tanh %119 : vector<8x32xf32>
    %121 = arith.mulf %111, %120 : vector<8x32xf32>
    %122 = arith.truncf %121 : vector<8x32xf32> to vector<8x32xbf16>
    %123 = tpu.concatenate %102, %122 in 1 : vector<8x32xbf16>, vector<8x32xbf16> -> vector<8x64xbf16>
    %cst_29 = arith.constant dense<0.000000e+00> : vector<8x256xf32>
    %124 = tpu.matmul %123, %6, %cst_29 {dimension_numbers = #tpu.dot_dimension_numbers<[1], [0], [0], [1], [0, 0, 1, 1], [], []>} : vector<8x64xbf16>, vector<64x256xbf16>, vector<8x256xf32> -> vector<8x256xf32>
    %125 = vector.broadcast %7 : vector<1x256xf32> to vector<8x256xf32>
    %126 = arith.addf %124, %125 : vector<8x256xf32>
    %127 = vector.extract_strided_slice %126 {offsets = [0, 0], sizes = [8, 128], strides = [1, 1]} : vector<8x256xf32> to vector<8x128xf32>
    %128 = vector.extract_strided_slice %5 {offsets = [24, 0], sizes = [8, 128], strides = [1, 1]} : vector<64x128xf32> to vector<8x128xf32>
    %129 = arith.addf %127, %128 : vector<8x128xf32>
    %130 = arith.negf %129 : vector<8x128xf32>
    %131 = math.exp %130 : vector<8x128xf32>
    %cst_30 = arith.constant 1.000000e+00 : f32
    %132 = vector.broadcast %cst_30 : f32 to vector<8x128xf32>
    %133 = arith.addf %132, %131 : vector<8x128xf32>
    %134 = arith.divf %132, %133 : vector<8x128xf32>
    %135 = vector.extract_strided_slice %134 {offsets = [0, 0], sizes = [8, 32], strides = [1, 1]} : vector<8x128xf32> to vector<8x32xf32>
    %136 = vector.extract_strided_slice %134 {offsets = [0, 32], sizes = [8, 32], strides = [1, 1]} : vector<8x128xf32> to vector<8x32xf32>
    %137 = vector.extract_strided_slice %134 {offsets = [0, 64], sizes = [8, 32], strides = [1, 1]} : vector<8x128xf32> to vector<8x32xf32>
    %138 = vector.extract_strided_slice %134 {offsets = [0, 96], sizes = [8, 32], strides = [1, 1]} : vector<8x128xf32> to vector<8x32xf32>
    %cst_31 = arith.constant 2.000000e+00 : f32
    %139 = vector.broadcast %cst_31 : f32 to vector<8x32xf32>
    %140 = arith.mulf %139, %138 : vector<8x32xf32>
    %cst_32 = arith.constant 1.000000e+00 : f32
    %141 = vector.broadcast %cst_32 : f32 to vector<8x32xf32>
    %142 = arith.subf %140, %141 : vector<8x32xf32>
    %143 = arith.mulf %136, %99 : vector<8x32xf32>
    %144 = arith.mulf %135, %142 : vector<8x32xf32>
    %145 = arith.addf %143, %144 : vector<8x32xf32>
    %146 = math.tanh %145 : vector<8x32xf32>
    %147 = arith.mulf %137, %146 : vector<8x32xf32>
    %148 = arith.truncf %147 : vector<8x32xf32> to vector<8x32xbf16>
    %149 = vector.extract_strided_slice %126 {offsets = [0, 128], sizes = [8, 128], strides = [1, 1]} : vector<8x256xf32> to vector<8x128xf32>
    %150 = arith.negf %149 : vector<8x128xf32>
    %151 = math.exp %150 : vector<8x128xf32>
    %cst_33 = arith.constant 1.000000e+00 : f32
    %152 = vector.broadcast %cst_33 : f32 to vector<8x128xf32>
    %153 = arith.addf %152, %151 : vector<8x128xf32>
    %154 = arith.divf %152, %153 : vector<8x128xf32>
    %155 = vector.extract_strided_slice %154 {offsets = [0, 0], sizes = [8, 32], strides = [1, 1]} : vector<8x128xf32> to vector<8x32xf32>
    %156 = vector.extract_strided_slice %154 {offsets = [0, 32], sizes = [8, 32], strides = [1, 1]} : vector<8x128xf32> to vector<8x32xf32>
    %157 = vector.extract_strided_slice %154 {offsets = [0, 64], sizes = [8, 32], strides = [1, 1]} : vector<8x128xf32> to vector<8x32xf32>
    %158 = vector.extract_strided_slice %154 {offsets = [0, 96], sizes = [8, 32], strides = [1, 1]} : vector<8x128xf32> to vector<8x32xf32>
    %cst_34 = arith.constant 2.000000e+00 : f32
    %159 = vector.broadcast %cst_34 : f32 to vector<8x32xf32>
    %160 = arith.mulf %159, %158 : vector<8x32xf32>
    %cst_35 = arith.constant 1.000000e+00 : f32
    %161 = vector.broadcast %cst_35 : f32 to vector<8x32xf32>
    %162 = arith.subf %160, %161 : vector<8x32xf32>
    %163 = arith.mulf %156, %119 : vector<8x32xf32>
    %164 = arith.mulf %155, %162 : vector<8x32xf32>
    %165 = arith.addf %163, %164 : vector<8x32xf32>
    %166 = math.tanh %165 : vector<8x32xf32>
    %167 = arith.mulf %157, %166 : vector<8x32xf32>
    %168 = arith.truncf %167 : vector<8x32xf32> to vector<8x32xbf16>
    %169 = tpu.concatenate %148, %168 in 1 : vector<8x32xbf16>, vector<8x32xbf16> -> vector<8x64xbf16>
    %cst_36 = arith.constant dense<0.000000e+00> : vector<8x256xf32>
    %170 = tpu.matmul %169, %6, %cst_36 {dimension_numbers = #tpu.dot_dimension_numbers<[1], [0], [0], [1], [0, 0, 1, 1], [], []>} : vector<8x64xbf16>, vector<64x256xbf16>, vector<8x256xf32> -> vector<8x256xf32>
    %171 = vector.broadcast %7 : vector<1x256xf32> to vector<8x256xf32>
    %172 = arith.addf %170, %171 : vector<8x256xf32>
    %173 = vector.extract_strided_slice %172 {offsets = [0, 0], sizes = [8, 128], strides = [1, 1]} : vector<8x256xf32> to vector<8x128xf32>
    %174 = vector.extract_strided_slice %5 {offsets = [32, 0], sizes = [8, 128], strides = [1, 1]} : vector<64x128xf32> to vector<8x128xf32>
    %175 = arith.addf %173, %174 : vector<8x128xf32>
    %176 = arith.negf %175 : vector<8x128xf32>
    %177 = math.exp %176 : vector<8x128xf32>
    %cst_37 = arith.constant 1.000000e+00 : f32
    %178 = vector.broadcast %cst_37 : f32 to vector<8x128xf32>
    %179 = arith.addf %178, %177 : vector<8x128xf32>
    %180 = arith.divf %178, %179 : vector<8x128xf32>
    %181 = vector.extract_strided_slice %180 {offsets = [0, 0], sizes = [8, 32], strides = [1, 1]} : vector<8x128xf32> to vector<8x32xf32>
    %182 = vector.extract_strided_slice %180 {offsets = [0, 32], sizes = [8, 32], strides = [1, 1]} : vector<8x128xf32> to vector<8x32xf32>
    %183 = vector.extract_strided_slice %180 {offsets = [0, 64], sizes = [8, 32], strides = [1, 1]} : vector<8x128xf32> to vector<8x32xf32>
    %184 = vector.extract_strided_slice %180 {offsets = [0, 96], sizes = [8, 32], strides = [1, 1]} : vector<8x128xf32> to vector<8x32xf32>
    %cst_38 = arith.constant 2.000000e+00 : f32
    %185 = vector.broadcast %cst_38 : f32 to vector<8x32xf32>
    %186 = arith.mulf %185, %184 : vector<8x32xf32>
    %cst_39 = arith.constant 1.000000e+00 : f32
    %187 = vector.broadcast %cst_39 : f32 to vector<8x32xf32>
    %188 = arith.subf %186, %187 : vector<8x32xf32>
    %189 = arith.mulf %182, %145 : vector<8x32xf32>
    %190 = arith.mulf %181, %188 : vector<8x32xf32>
    %191 = arith.addf %189, %190 : vector<8x32xf32>
    %192 = math.tanh %191 : vector<8x32xf32>
    %193 = arith.mulf %183, %192 : vector<8x32xf32>
    %194 = arith.truncf %193 : vector<8x32xf32> to vector<8x32xbf16>
    %195 = vector.extract_strided_slice %172 {offsets = [0, 128], sizes = [8, 128], strides = [1, 1]} : vector<8x256xf32> to vector<8x128xf32>
    %196 = arith.negf %195 : vector<8x128xf32>
    %197 = math.exp %196 : vector<8x128xf32>
    %cst_40 = arith.constant 1.000000e+00 : f32
    %198 = vector.broadcast %cst_40 : f32 to vector<8x128xf32>
    %199 = arith.addf %198, %197 : vector<8x128xf32>
    %200 = arith.divf %198, %199 : vector<8x128xf32>
    %201 = vector.extract_strided_slice %200 {offsets = [0, 0], sizes = [8, 32], strides = [1, 1]} : vector<8x128xf32> to vector<8x32xf32>
    %202 = vector.extract_strided_slice %200 {offsets = [0, 32], sizes = [8, 32], strides = [1, 1]} : vector<8x128xf32> to vector<8x32xf32>
    %203 = vector.extract_strided_slice %200 {offsets = [0, 64], sizes = [8, 32], strides = [1, 1]} : vector<8x128xf32> to vector<8x32xf32>
    %204 = vector.extract_strided_slice %200 {offsets = [0, 96], sizes = [8, 32], strides = [1, 1]} : vector<8x128xf32> to vector<8x32xf32>
    %cst_41 = arith.constant 2.000000e+00 : f32
    %205 = vector.broadcast %cst_41 : f32 to vector<8x32xf32>
    %206 = arith.mulf %205, %204 : vector<8x32xf32>
    %cst_42 = arith.constant 1.000000e+00 : f32
    %207 = vector.broadcast %cst_42 : f32 to vector<8x32xf32>
    %208 = arith.subf %206, %207 : vector<8x32xf32>
    %209 = arith.mulf %202, %165 : vector<8x32xf32>
    %210 = arith.mulf %201, %208 : vector<8x32xf32>
    %211 = arith.addf %209, %210 : vector<8x32xf32>
    %212 = math.tanh %211 : vector<8x32xf32>
    %213 = arith.mulf %203, %212 : vector<8x32xf32>
    %214 = arith.truncf %213 : vector<8x32xf32> to vector<8x32xbf16>
    %215 = tpu.concatenate %194, %214 in 1 : vector<8x32xbf16>, vector<8x32xbf16> -> vector<8x64xbf16>
    %cst_43 = arith.constant dense<0.000000e+00> : vector<8x256xf32>
    %216 = tpu.matmul %215, %6, %cst_43 {dimension_numbers = #tpu.dot_dimension_numbers<[1], [0], [0], [1], [0, 0, 1, 1], [], []>} : vector<8x64xbf16>, vector<64x256xbf16>, vector<8x256xf32> -> vector<8x256xf32>
    %217 = vector.broadcast %7 : vector<1x256xf32> to vector<8x256xf32>
    %218 = arith.addf %216, %217 : vector<8x256xf32>
    %219 = vector.extract_strided_slice %218 {offsets = [0, 0], sizes = [8, 128], strides = [1, 1]} : vector<8x256xf32> to vector<8x128xf32>
    %220 = vector.extract_strided_slice %5 {offsets = [40, 0], sizes = [8, 128], strides = [1, 1]} : vector<64x128xf32> to vector<8x128xf32>
    %221 = arith.addf %219, %220 : vector<8x128xf32>
    %222 = arith.negf %221 : vector<8x128xf32>
    %223 = math.exp %222 : vector<8x128xf32>
    %cst_44 = arith.constant 1.000000e+00 : f32
    %224 = vector.broadcast %cst_44 : f32 to vector<8x128xf32>
    %225 = arith.addf %224, %223 : vector<8x128xf32>
    %226 = arith.divf %224, %225 : vector<8x128xf32>
    %227 = vector.extract_strided_slice %226 {offsets = [0, 0], sizes = [8, 32], strides = [1, 1]} : vector<8x128xf32> to vector<8x32xf32>
    %228 = vector.extract_strided_slice %226 {offsets = [0, 32], sizes = [8, 32], strides = [1, 1]} : vector<8x128xf32> to vector<8x32xf32>
    %229 = vector.extract_strided_slice %226 {offsets = [0, 64], sizes = [8, 32], strides = [1, 1]} : vector<8x128xf32> to vector<8x32xf32>
    %230 = vector.extract_strided_slice %226 {offsets = [0, 96], sizes = [8, 32], strides = [1, 1]} : vector<8x128xf32> to vector<8x32xf32>
    %cst_45 = arith.constant 2.000000e+00 : f32
    %231 = vector.broadcast %cst_45 : f32 to vector<8x32xf32>
    %232 = arith.mulf %231, %230 : vector<8x32xf32>
    %cst_46 = arith.constant 1.000000e+00 : f32
    %233 = vector.broadcast %cst_46 : f32 to vector<8x32xf32>
    %234 = arith.subf %232, %233 : vector<8x32xf32>
    %235 = arith.mulf %228, %191 : vector<8x32xf32>
    %236 = arith.mulf %227, %234 : vector<8x32xf32>
    %237 = arith.addf %235, %236 : vector<8x32xf32>
    %238 = math.tanh %237 : vector<8x32xf32>
    %239 = arith.mulf %229, %238 : vector<8x32xf32>
    %240 = arith.truncf %239 : vector<8x32xf32> to vector<8x32xbf16>
    %241 = vector.extract_strided_slice %218 {offsets = [0, 128], sizes = [8, 128], strides = [1, 1]} : vector<8x256xf32> to vector<8x128xf32>
    %242 = arith.negf %241 : vector<8x128xf32>
    %243 = math.exp %242 : vector<8x128xf32>
    %cst_47 = arith.constant 1.000000e+00 : f32
    %244 = vector.broadcast %cst_47 : f32 to vector<8x128xf32>
    %245 = arith.addf %244, %243 : vector<8x128xf32>
    %246 = arith.divf %244, %245 : vector<8x128xf32>
    %247 = vector.extract_strided_slice %246 {offsets = [0, 0], sizes = [8, 32], strides = [1, 1]} : vector<8x128xf32> to vector<8x32xf32>
    %248 = vector.extract_strided_slice %246 {offsets = [0, 32], sizes = [8, 32], strides = [1, 1]} : vector<8x128xf32> to vector<8x32xf32>
    %249 = vector.extract_strided_slice %246 {offsets = [0, 64], sizes = [8, 32], strides = [1, 1]} : vector<8x128xf32> to vector<8x32xf32>
    %250 = vector.extract_strided_slice %246 {offsets = [0, 96], sizes = [8, 32], strides = [1, 1]} : vector<8x128xf32> to vector<8x32xf32>
    %cst_48 = arith.constant 2.000000e+00 : f32
    %251 = vector.broadcast %cst_48 : f32 to vector<8x32xf32>
    %252 = arith.mulf %251, %250 : vector<8x32xf32>
    %cst_49 = arith.constant 1.000000e+00 : f32
    %253 = vector.broadcast %cst_49 : f32 to vector<8x32xf32>
    %254 = arith.subf %252, %253 : vector<8x32xf32>
    %255 = arith.mulf %248, %211 : vector<8x32xf32>
    %256 = arith.mulf %247, %254 : vector<8x32xf32>
    %257 = arith.addf %255, %256 : vector<8x32xf32>
    %258 = math.tanh %257 : vector<8x32xf32>
    %259 = arith.mulf %249, %258 : vector<8x32xf32>
    %260 = arith.truncf %259 : vector<8x32xf32> to vector<8x32xbf16>
    %261 = tpu.concatenate %240, %260 in 1 : vector<8x32xbf16>, vector<8x32xbf16> -> vector<8x64xbf16>
    %cst_50 = arith.constant dense<0.000000e+00> : vector<8x256xf32>
    %262 = tpu.matmul %261, %6, %cst_50 {dimension_numbers = #tpu.dot_dimension_numbers<[1], [0], [0], [1], [0, 0, 1, 1], [], []>} : vector<8x64xbf16>, vector<64x256xbf16>, vector<8x256xf32> -> vector<8x256xf32>
    %263 = vector.broadcast %7 : vector<1x256xf32> to vector<8x256xf32>
    %264 = arith.addf %262, %263 : vector<8x256xf32>
    %265 = vector.extract_strided_slice %264 {offsets = [0, 0], sizes = [8, 128], strides = [1, 1]} : vector<8x256xf32> to vector<8x128xf32>
    %266 = vector.extract_strided_slice %5 {offsets = [48, 0], sizes = [8, 128], strides = [1, 1]} : vector<64x128xf32> to vector<8x128xf32>
    %267 = arith.addf %265, %266 : vector<8x128xf32>
    %268 = arith.negf %267 : vector<8x128xf32>
    %269 = math.exp %268 : vector<8x128xf32>
    %cst_51 = arith.constant 1.000000e+00 : f32
    %270 = vector.broadcast %cst_51 : f32 to vector<8x128xf32>
    %271 = arith.addf %270, %269 : vector<8x128xf32>
    %272 = arith.divf %270, %271 : vector<8x128xf32>
    %273 = vector.extract_strided_slice %272 {offsets = [0, 0], sizes = [8, 32], strides = [1, 1]} : vector<8x128xf32> to vector<8x32xf32>
    %274 = vector.extract_strided_slice %272 {offsets = [0, 32], sizes = [8, 32], strides = [1, 1]} : vector<8x128xf32> to vector<8x32xf32>
    %275 = vector.extract_strided_slice %272 {offsets = [0, 64], sizes = [8, 32], strides = [1, 1]} : vector<8x128xf32> to vector<8x32xf32>
    %276 = vector.extract_strided_slice %272 {offsets = [0, 96], sizes = [8, 32], strides = [1, 1]} : vector<8x128xf32> to vector<8x32xf32>
    %cst_52 = arith.constant 2.000000e+00 : f32
    %277 = vector.broadcast %cst_52 : f32 to vector<8x32xf32>
    %278 = arith.mulf %277, %276 : vector<8x32xf32>
    %cst_53 = arith.constant 1.000000e+00 : f32
    %279 = vector.broadcast %cst_53 : f32 to vector<8x32xf32>
    %280 = arith.subf %278, %279 : vector<8x32xf32>
    %281 = arith.mulf %274, %237 : vector<8x32xf32>
    %282 = arith.mulf %273, %280 : vector<8x32xf32>
    %283 = arith.addf %281, %282 : vector<8x32xf32>
    %284 = math.tanh %283 : vector<8x32xf32>
    %285 = arith.mulf %275, %284 : vector<8x32xf32>
    %286 = arith.truncf %285 : vector<8x32xf32> to vector<8x32xbf16>
    %287 = vector.extract_strided_slice %264 {offsets = [0, 128], sizes = [8, 128], strides = [1, 1]} : vector<8x256xf32> to vector<8x128xf32>
    %288 = arith.negf %287 : vector<8x128xf32>
    %289 = math.exp %288 : vector<8x128xf32>
    %cst_54 = arith.constant 1.000000e+00 : f32
    %290 = vector.broadcast %cst_54 : f32 to vector<8x128xf32>
    %291 = arith.addf %290, %289 : vector<8x128xf32>
    %292 = arith.divf %290, %291 : vector<8x128xf32>
    %293 = vector.extract_strided_slice %292 {offsets = [0, 0], sizes = [8, 32], strides = [1, 1]} : vector<8x128xf32> to vector<8x32xf32>
    %294 = vector.extract_strided_slice %292 {offsets = [0, 32], sizes = [8, 32], strides = [1, 1]} : vector<8x128xf32> to vector<8x32xf32>
    %295 = vector.extract_strided_slice %292 {offsets = [0, 64], sizes = [8, 32], strides = [1, 1]} : vector<8x128xf32> to vector<8x32xf32>
    %296 = vector.extract_strided_slice %292 {offsets = [0, 96], sizes = [8, 32], strides = [1, 1]} : vector<8x128xf32> to vector<8x32xf32>
    %cst_55 = arith.constant 2.000000e+00 : f32
    %297 = vector.broadcast %cst_55 : f32 to vector<8x32xf32>
    %298 = arith.mulf %297, %296 : vector<8x32xf32>
    %cst_56 = arith.constant 1.000000e+00 : f32
    %299 = vector.broadcast %cst_56 : f32 to vector<8x32xf32>
    %300 = arith.subf %298, %299 : vector<8x32xf32>
    %301 = arith.mulf %294, %257 : vector<8x32xf32>
    %302 = arith.mulf %293, %300 : vector<8x32xf32>
    %303 = arith.addf %301, %302 : vector<8x32xf32>
    %304 = math.tanh %303 : vector<8x32xf32>
    %305 = arith.mulf %295, %304 : vector<8x32xf32>
    %306 = arith.truncf %305 : vector<8x32xf32> to vector<8x32xbf16>
    %307 = tpu.concatenate %286, %306 in 1 : vector<8x32xbf16>, vector<8x32xbf16> -> vector<8x64xbf16>
    %cst_57 = arith.constant dense<0.000000e+00> : vector<8x256xf32>
    %308 = tpu.matmul %307, %6, %cst_57 {dimension_numbers = #tpu.dot_dimension_numbers<[1], [0], [0], [1], [0, 0, 1, 1], [], []>} : vector<8x64xbf16>, vector<64x256xbf16>, vector<8x256xf32> -> vector<8x256xf32>
    %309 = vector.broadcast %7 : vector<1x256xf32> to vector<8x256xf32>
    %310 = arith.addf %308, %309 : vector<8x256xf32>
    %311 = vector.extract_strided_slice %310 {offsets = [0, 0], sizes = [8, 128], strides = [1, 1]} : vector<8x256xf32> to vector<8x128xf32>
    %312 = vector.extract_strided_slice %5 {offsets = [56, 0], sizes = [8, 128], strides = [1, 1]} : vector<64x128xf32> to vector<8x128xf32>
    %313 = arith.addf %311, %312 : vector<8x128xf32>
    %314 = arith.negf %313 : vector<8x128xf32>
    %315 = math.exp %314 : vector<8x128xf32>
    %cst_58 = arith.constant 1.000000e+00 : f32
    %316 = vector.broadcast %cst_58 : f32 to vector<8x128xf32>
    %317 = arith.addf %316, %315 : vector<8x128xf32>
    %318 = arith.divf %316, %317 : vector<8x128xf32>
    %319 = vector.extract_strided_slice %318 {offsets = [0, 0], sizes = [8, 32], strides = [1, 1]} : vector<8x128xf32> to vector<8x32xf32>
    %320 = vector.extract_strided_slice %318 {offsets = [0, 32], sizes = [8, 32], strides = [1, 1]} : vector<8x128xf32> to vector<8x32xf32>
    %321 = vector.extract_strided_slice %318 {offsets = [0, 64], sizes = [8, 32], strides = [1, 1]} : vector<8x128xf32> to vector<8x32xf32>
    %322 = vector.extract_strided_slice %318 {offsets = [0, 96], sizes = [8, 32], strides = [1, 1]} : vector<8x128xf32> to vector<8x32xf32>
    %cst_59 = arith.constant 2.000000e+00 : f32
    %323 = vector.broadcast %cst_59 : f32 to vector<8x32xf32>
    %324 = arith.mulf %323, %322 : vector<8x32xf32>
    %cst_60 = arith.constant 1.000000e+00 : f32
    %325 = vector.broadcast %cst_60 : f32 to vector<8x32xf32>
    %326 = arith.subf %324, %325 : vector<8x32xf32>
    %327 = arith.mulf %320, %283 : vector<8x32xf32>
    %328 = arith.mulf %319, %326 : vector<8x32xf32>
    %329 = arith.addf %327, %328 : vector<8x32xf32>
    %330 = math.tanh %329 : vector<8x32xf32>
    %331 = arith.mulf %321, %330 : vector<8x32xf32>
    %332 = arith.truncf %331 : vector<8x32xf32> to vector<8x32xbf16>
    %333 = vector.extract_strided_slice %310 {offsets = [0, 128], sizes = [8, 128], strides = [1, 1]} : vector<8x256xf32> to vector<8x128xf32>
    %334 = arith.negf %333 : vector<8x128xf32>
    %335 = math.exp %334 : vector<8x128xf32>
    %cst_61 = arith.constant 1.000000e+00 : f32
    %336 = vector.broadcast %cst_61 : f32 to vector<8x128xf32>
    %337 = arith.addf %336, %335 : vector<8x128xf32>
    %338 = arith.divf %336, %337 : vector<8x128xf32>
    %339 = vector.extract_strided_slice %338 {offsets = [0, 0], sizes = [8, 32], strides = [1, 1]} : vector<8x128xf32> to vector<8x32xf32>
    %340 = vector.extract_strided_slice %338 {offsets = [0, 32], sizes = [8, 32], strides = [1, 1]} : vector<8x128xf32> to vector<8x32xf32>
    %341 = vector.extract_strided_slice %338 {offsets = [0, 64], sizes = [8, 32], strides = [1, 1]} : vector<8x128xf32> to vector<8x32xf32>
    %342 = vector.extract_strided_slice %338 {offsets = [0, 96], sizes = [8, 32], strides = [1, 1]} : vector<8x128xf32> to vector<8x32xf32>
    %cst_62 = arith.constant 2.000000e+00 : f32
    %343 = vector.broadcast %cst_62 : f32 to vector<8x32xf32>
    %344 = arith.mulf %343, %342 : vector<8x32xf32>
    %cst_63 = arith.constant 1.000000e+00 : f32
    %345 = vector.broadcast %cst_63 : f32 to vector<8x32xf32>
    %346 = arith.subf %344, %345 : vector<8x32xf32>
    %347 = arith.mulf %340, %303 : vector<8x32xf32>
    %348 = arith.mulf %339, %346 : vector<8x32xf32>
    %349 = arith.addf %347, %348 : vector<8x32xf32>
    %350 = math.tanh %349 : vector<8x32xf32>
    %351 = arith.mulf %341, %350 : vector<8x32xf32>
    %352 = arith.truncf %351 : vector<8x32xf32> to vector<8x32xbf16>
    %353 = tpu.concatenate %332, %352 in 1 : vector<8x32xbf16>, vector<8x32xbf16> -> vector<8x64xbf16>
    %cst_64 = arith.constant dense<0.000000e+00> : vector<8x256xf32>
    %354 = tpu.matmul %353, %6, %cst_64 {dimension_numbers = #tpu.dot_dimension_numbers<[1], [0], [0], [1], [0, 0, 1, 1], [], []>} : vector<8x64xbf16>, vector<64x256xbf16>, vector<8x256xf32> -> vector<8x256xf32>
    %355 = vector.broadcast %7 : vector<1x256xf32> to vector<8x256xf32>
    %356 = arith.addf %354, %355 : vector<8x256xf32>
    %357 = vector.extract_strided_slice %356 {offsets = [0, 128], sizes = [8, 128], strides = [1, 1]} : vector<8x256xf32> to vector<8x128xf32>
    %358 = arith.negf %357 : vector<8x128xf32>
    %359 = math.exp %358 : vector<8x128xf32>
    %cst_65 = arith.constant 1.000000e+00 : f32
    %360 = vector.broadcast %cst_65 : f32 to vector<8x128xf32>
    %361 = arith.addf %360, %359 : vector<8x128xf32>
    %362 = arith.divf %360, %361 : vector<8x128xf32>
    %363 = vector.extract_strided_slice %362 {offsets = [0, 0], sizes = [8, 32], strides = [1, 1]} : vector<8x128xf32> to vector<8x32xf32>
    %364 = vector.extract_strided_slice %362 {offsets = [0, 32], sizes = [8, 32], strides = [1, 1]} : vector<8x128xf32> to vector<8x32xf32>
    %365 = vector.extract_strided_slice %362 {offsets = [0, 64], sizes = [8, 32], strides = [1, 1]} : vector<8x128xf32> to vector<8x32xf32>
    %366 = vector.extract_strided_slice %362 {offsets = [0, 96], sizes = [8, 32], strides = [1, 1]} : vector<8x128xf32> to vector<8x32xf32>
    %cst_66 = arith.constant 2.000000e+00 : f32
    %367 = vector.broadcast %cst_66 : f32 to vector<8x32xf32>
    %368 = arith.mulf %367, %366 : vector<8x32xf32>
    %cst_67 = arith.constant 1.000000e+00 : f32
    %369 = vector.broadcast %cst_67 : f32 to vector<8x32xf32>
    %370 = arith.subf %368, %369 : vector<8x32xf32>
    %371 = arith.mulf %364, %349 : vector<8x32xf32>
    %372 = arith.mulf %363, %370 : vector<8x32xf32>
    %373 = arith.addf %371, %372 : vector<8x32xf32>
    %374 = math.tanh %373 : vector<8x32xf32>
    %375 = arith.mulf %365, %374 : vector<8x32xf32>
    %376 = tpu.concatenate %331, %375 in 1 : vector<8x32xf32>, vector<8x32xf32> -> vector<8x64xf32>
    %c0_68 = arith.constant 0 : index
    %c0_69 = arith.constant 0 : index
    %377 = vector.load %arg5[%c0_68, %c0_69] : memref<1x64xf32, #tpu.memory_space<vmem>>, vector<1x64xf32>
    %378 = vector.broadcast %377 : vector<1x64xf32> to vector<8x64xf32>
    %379 = arith.mulf %376, %378 : vector<8x64xf32>
    %cst_70 = arith.constant dense<0.000000e+00> : vector<8xf32>
    %380 = vector.multi_reduction <add>, %379, %cst_70 [1] : vector<8x64xf32> to vector<8xf32>
    %381 = vector.shape_cast %380 : vector<8xf32> to vector<8x1xf32>
    %c0_71 = arith.constant 0 : index
    %c0_72 = arith.constant 0 : index
    %382 = vector.load %arg6[%c0_71, %c0_72] : memref<1x1xf32, #tpu.memory_space<vmem>>, vector<1x1xf32>
    %383 = vector.broadcast %382 : vector<1x1xf32> to vector<8x1xf32>
    %384 = arith.addf %381, %383 : vector<8x1xf32>
    %385 = arith.negf %384 : vector<8x1xf32>
    %386 = math.exp %385 : vector<8x1xf32>
    %cst_73 = arith.constant 1.000000e+00 : f32
    %387 = vector.broadcast %cst_73 : f32 to vector<8x1xf32>
    %388 = arith.addf %387, %386 : vector<8x1xf32>
    %389 = arith.divf %387, %388 : vector<8x1xf32>
    %c0_74 = arith.constant 0 : index
    %c0_75 = arith.constant 0 : index
    %390 = vector.load %arg7[%c0_74, %c0_75] : memref<8x1xf32, #tpu.memory_space<vmem>>, vector<8x1xf32>
    tpu.vector_store %arg7[%c0_74, %c0_75], %389 {strides = array<i32>} : memref<8x1xf32, #tpu.memory_space<vmem>>, vector<8x1xf32>,
    return
  }
}

</mosaic_0001>

<llo_original>
// kernel: tpu_custom_call.1
$region0: #{tpu_custom_call.1}
  #allocation0 [shape = 'u32[]', space=smem, size = 0x4, offset = 0x4, fixed_abs, tag = 'smem constant byte address 0x4 - core index']
  #allocation1 [shape = 'u32[144,128]{1,0:T(1,128)}', space=vmem, size = 0x12000, scoped, tag = 'internal scratch']
  #allocation2 [shape = 'f32[1,1]{1,0:T(1,128)S(1)}', space=vmem, size = 0x200, scoped, tag = 'scoped memory for tpu_custom_call.1']
  %s0 = inlined_call_operand.vmem [shape: bf16[64,4], index: 0, kind: input, shape index: {}]
  %s1 = inlined_call_operand.vmem [shape: bf16[4,128], index: 1, kind: input, shape index: {}]
  %s2 = inlined_call_operand.vmem [shape: f32[1,128], index: 2, kind: input, shape index: {}]
  %s3 = inlined_call_operand.hbm [shape: bf16[64,256], index: 3, kind: input, shape index: {}]
  %s4 = inlined_call_operand.vmem [shape: f32[1,256], index: 4, kind: input, shape index: {}]
  %s5 = inlined_call_operand.vmem [shape: f32[1,64], index: 5, kind: input, shape index: {}]
  %s6 = inlined_call_operand.<no memory space> [shape: f32[1,1], index: 6, kind: input, shape index: {}]
  %s7 = inlined_call_operand.vmem [shape: f32[8,1], index: 7, kind: output, shape index: {}]
  %s8 = sld [smem:[#allocation0]]
  $region42: #{tpu_custom_call.1} parent=0
    _
  %s10 = ssub.s32 1, %s8
  %s11 = scalar_select 0, %s10, %s8
  %v12 = vstv %s6
  %13 = vst [vmem:[#allocation2] sm:$0x1] %v12
  $region1: #{tpu_custom_call.1} parent=0
    #allocation3 [shape = 'u8[32768]{0}', space=vmem, size = 0x8000, scoped, tag = 'input window, operand 3, single buffered']
    #allocation4 [shape = 's32[1]{0}', space=sflag, size = 0x4, scoped, tag = 'scoped memory for tpu_custom_call.1']
    %14 = vsyncpa [#allocation4], 0
    // Predicated region
    $region2: #{tpu_custom_call.1} parent=1 // pred_check
      _
    $region3: #{tpu_custom_call.1} parent=1 // pred_check_branch
      %16 = sbr.rel (0) target = $region5
    $region4: #{tpu_custom_call.1} parent=1 // pred_region
      _
    $region5: #{tpu_custom_call.1} parent=1 // pred_fallthru
      _
    // Predicated region
    $region6: #{tpu_custom_call.1} parent=1 // pred_check
      _
    $region7: #{tpu_custom_call.1} parent=1 // pred_check_branch
      %18 = sbr.rel (0) target = $region9
    $region8: #{tpu_custom_call.1} parent=1 // pred_region
      _
    $region9: #{tpu_custom_call.1} parent=1 // pred_fallthru
      _
    // Predicated region
    $region10: #{tpu_custom_call.1} parent=1 // pred_check
      _
    $region11: #{tpu_custom_call.1} parent=1 // pred_check_branch
      %20 = sbr.rel (0) target = $region13
    $region12: #{tpu_custom_call.1} parent=1 // pred_region
      _
    $region13: #{tpu_custom_call.1} parent=1 // pred_fallthru
      _
    // Predicated region
    $region14: #{tpu_custom_call.1} parent=1 // pred_check
      _
    $region15: #{tpu_custom_call.1} parent=1 // pred_check_branch
      %22 = sbr.rel (0) target = $region17
    $region16: #{tpu_custom_call.1} parent=1 // pred_region
      %s24 = ssub.s32 1024, 1024
      %25 = vsyncadd [#allocation4], %s24
      %s26 = sshll.u32 [#allocation3], 4
      %s27 = int_to_ptr.vmem [resolvable:$true] %s26
      %32 = dma.hbm_to_vmem [thread:$0]  %s3, 1024, %s27, [#allocation4], 128, 128, 8
    $region17: #{tpu_custom_call.1} parent=1 // pred_fallthru
      _
    // Predicated region
    $region18: #{tpu_custom_call.1} parent=1 // pred_check
      _
    $region19: #{tpu_custom_call.1} parent=1 // pred_check_branch
      %34 = sbr.rel (0) target = $region21
    $region20: #{tpu_custom_call.1} parent=1 // pred_region
      _
    $region21: #{tpu_custom_call.1} parent=1 // pred_fallthru
      _
    // Predicated region
    $region22: #{tpu_custom_call.1} parent=1 // pred_check
      _
    $region23: #{tpu_custom_call.1} parent=1 // pred_check_branch
      %36 = sbr.rel (0) target = $region25
    $region24: #{tpu_custom_call.1} parent=1 // pred_region
      _
    $region25: #{tpu_custom_call.1} parent=1 // pred_fallthru
      _
    // Predicated region
    $region26: #{tpu_custom_call.1} parent=1 // pred_check
      _
    $region27: #{tpu_custom_call.1} parent=1 // pred_check_branch
      %38 = sbr.rel (0) target = $region29
    $region28: #{tpu_custom_call.1} parent=1 // pred_region
      _
    $region29: #{tpu_custom_call.1} parent=1 // pred_fallthru
      _
    // Predicated region
    $region30: #{tpu_custom_call.1} parent=1 // pred_check
      _
    $region31: #{tpu_custom_call.1} parent=1 // pred_check_branch
      %40 = sbr.rel (0) target = $region33
    $region32: #{tpu_custom_call.1} parent=1 // pred_region
      %41 = dma.done [#allocation4], 1024
    $region33: #{tpu_custom_call.1} parent=1 // pred_fallthru
      _
    %v43 = vld [vmem:[%s0] sm:$0xf]
    %v44 = vld [vmem:[%s0 + $0x4] sm:$0xf]
    %v45 = vld [vmem:[%s0 + $0x8] sm:$0xf]
    %v46 = vld [vmem:[%s0 + $0xc] sm:$0xf]
    %v47 = vld [vmem:[%s0 + $0x10] sm:$0xf]
    %v48 = vld [vmem:[%s0 + $0x14] sm:$0xf]
    %v49 = vld [vmem:[%s0 + $0x18] sm:$0xf]
    %v50 = vld [vmem:[%s0 + $0x1c] sm:$0xf]
    %v51 = vld [vmem:[%s1] sm:$0x3]
    %v52 = vld [vmem:[%s2] sm:$0x1]
    %v54 = vlaneseq
    %v55 = vshrl.u32 %v54, 7
    %v56 = vsub.s32 0, %v55
    %v57 = vrot.slane %v52, %v56
    %v67 = vunpack.c.l.b16 %v43
    %v68 = vunpack.c.l.b16 %v44
    %v69 = vunpack.c.l.b16 %v45
    %v70 = vunpack.c.l.b16 %v46
    %v71 = vunpack.c.l.b16 %v47
    %v72 = vunpack.c.l.b16 %v48
    %v73 = vunpack.c.l.b16 %v49
    %v74 = vunpack.c.l.b16 %v50
    %v75 = vpack.c.b16 %v68, %v67
    %v76 = vpack.c.b16 %v70, %v69
    %v77 = vpack.c.b16 %v72, %v71
    %v78 = vpack.c.b16 %v74, %v73
    %vm79 = vcmask 31744
    %v81 = vsel %vm79, %v75, 0
    %v84 = vsel %vm79, %v76, 0
    %v87 = vsel %vm79, %v77, 0
    %v90 = vsel %vm79, %v78, 0
    %vm92 = vcmask 1041408
    %v94 = vsel %vm92, %v51, 0
    %96 = vmatprep.subr.bf16.mxu0 0
    %97 = vmatpush1.bf16.msra.mxu0 0
    %98 = vmatprep.subr.bf16.mxu0 0
    %99 = vmatpush1.bf16.msra.mxu0 0
    %100 = vmatprep.subr.bf16.mxu0 0
    %101 = vmatpush1.bf16.msra.mxu0 0
    %102 = vmatprep.subr.bf16.mxu0 0
    %103 = vmatpush1.bf16.msra.mxu0 0
    %104 = vmatprep.subr.bf16.mxu0 0
    %105 = vmatpush1.bf16.msra.mxu0 0
    %106 = vmatprep.subr.bf16.mxu0 0
    %107 = vmatpush1.bf16.msra.mxu0 0
    %108 = vmatprep.subr.bf16.mxu0 0
    %109 = vmatpush1.bf16.msra.mxu0 0
    %110 = vmatprep.subr.bf16.mxu0 0
    %111 = vmatpush1.bf16.msra.mxu0 %v94
    %112 = vmatprep.subr.bf16.mxu0 0
    %113 = vmatpush2.bf16.msra.mxu0 0
    %114 = vmatprep.subr.bf16.mxu0 0
    %115 = vmatpush2.bf16.msra.mxu0 0
    %116 = vmatprep.subr.bf16.mxu0 0
    %117 = vmatpush2.bf16.msra.mxu0 0
    %118 = vmatprep.subr.bf16.mxu0 0
    %119 = vmatpush2.bf16.msra.mxu0 0
    %120 = vmatprep.subr.bf16.mxu0 0
    %121 = vmatpush2.bf16.msra.mxu0 0
    %122 = vmatprep.subr.bf16.mxu0 0
    %123 = vmatpush2.bf16.msra.mxu0 0
    %124 = vmatprep.subr.bf16.mxu0 0
    %125 = vmatpush2.bf16.msra.mxu0 0
    %126 = vmatprep.subr.bf16.mxu0 0
    %127 = vmatpush2.bf16.msra.mxu0 0
    %128 = vmatprep.mubr.bf16.mxu0 0
    %129 = vmatmul.mubr.bf16.gmra.mxu0 %v81
    %v130 = vpop.f32.mrf.mxu0
    %v131 = vadd.f32 %v57, %v130
    %v132 = vpop.f32.mrf.mxu0
    %v133 = vpop.f32.mrf.mxu0
    %v134 = vadd.f32 %v57, %v133
    %v135 = vpop.f32.mrf.mxu0
    %136 = vmatprep.mubr.bf16.mxu0 0
    %137 = vmatmul.mubr.bf16.gmra.mxu0 %v84
    %v138 = vpop.f32.mrf.mxu0
    %v139 = vadd.f32 %v57, %v138
    %v140 = vpop.f32.mrf.mxu0
    %v141 = vpop.f32.mrf.mxu0
    %v142 = vadd.f32 %v57, %v141
    %v143 = vpop.f32.mrf.mxu0
    %144 = vmatprep.mubr.bf16.mxu0 0
    %145 = vmatmul.mubr.bf16.gmra.mxu0 %v87
    %v146 = vpop.f32.mrf.mxu0
    %v147 = vadd.f32 %v57, %v146
    %v148 = vpop.f32.mrf.mxu0
    %v149 = vpop.f32.mrf.mxu0
    %v150 = vadd.f32 %v57, %v149
    %v151 = vpop.f32.mrf.mxu0
    %152 = vmatprep.mubr.bf16.mxu0 0
    %153 = vmatmul.mubr.bf16.gmra.mxu0 %v90
    %v154 = vpop.f32.mrf.mxu0
    %v155 = vadd.f32 %v57, %v154
    %v156 = vpop.f32.mrf.mxu0
    %v157 = vpop.f32.mrf.mxu0
    %v158 = vadd.f32 %v57, %v157
    %v159 = vpop.f32.mrf.mxu0
    %160 = vdwg.mxu0
    %v161 = vld [vmem:[#allocation3] sm:$0xff]
    %v162 = vld [vmem:[#allocation3 + $0x8] sm:$0xff]
    %v163 = vld [vmem:[#allocation3 + $0x10] sm:$0xff]
    %v164 = vld [vmem:[#allocation3 + $0x18] sm:$0xff]
    %v165 = vld [vmem:[#allocation3 + $0x20] sm:$0xff]
    %v166 = vld [vmem:[#allocation3 + $0x28] sm:$0xff]
    %v167 = vld [vmem:[#allocation3 + $0x30] sm:$0xff]
    %v168 = vld [vmem:[#allocation3 + $0x38] sm:$0xff]
    %v169 = vld [vmem:[%s4] sm:$0x3]
    %v170 = vxor.u32 %v131, 2147483648
    %v171 = vmul.f32 %v170, 1.442695
    %v172 = vpow.pop %v171
    %v173 = vadd.f32 %v172, 1.0
    %v174 = vrcp.pop %v173
    %v175 = vmul.f32 1.0, %v174
    %v176 = vmul.f32 %v175, 2.0
    %v177 = vsub.f32 %v176, 1.0
    %v178 = vmul.f32 %v175, 0.0
    %180 = vrot.lane.b32.xlu0 %v177, 32
    %v181 = vpop.permute.xlu0 %180
    %v183 = vmul.f32 %v175, %v181
    %185 = vrot.lane.b32.xlu0 %v183, 32
    %v186 = vpop.permute.xlu0 %185
    %v188 = vadd.f32 %v178, %v186
    %v189 = vtanh.pop %v188
    %191 = vrot.lane.b32.xlu0 %v189, 32
    %v192 = vpop.permute.xlu0 %191
    %v194 = vmul.f32 %v175, %v192
    %v195 = vpack.c.bf16 %v194, %v194
    %197 = vrot.lane.b32.xlu0 %v195, 64
    %v198 = vpop.permute.xlu0 %197
    %vm199 = vcmask 261120
    %v202 = vsel %vm199, %v198, 0
    %v204 = vlaneseq
    %v205 = vshrl.u32 %v204, 7
    %v206 = vsub.s32 0, %v205
    %v207 = vrot.slane %v169, %v206
    %v208 = vlaneseq
    %v209 = vshrl.u32 %v208, 7
    %v210 = vsub.s32 1, %v209
    %v211 = vrot.slane %v169, %v210
    %v222 = vunpack.c.l.b16 %v161
    %v223 = vunpack.c.h.b16 %v161
    %v224 = vunpack.c.l.b16 %v162
    %v225 = vunpack.c.h.b16 %v162
    %v226 = vunpack.c.l.b16 %v163
    %v227 = vunpack.c.h.b16 %v163
    %v228 = vunpack.c.l.b16 %v164
    %v229 = vunpack.c.h.b16 %v164
    %v230 = vunpack.c.l.b16 %v165
    %v231 = vunpack.c.h.b16 %v165
    %v232 = vunpack.c.l.b16 %v166
    %v233 = vunpack.c.h.b16 %v166
    %v234 = vunpack.c.l.b16 %v167
    %v235 = vunpack.c.h.b16 %v167
    %v236 = vunpack.c.l.b16 %v168
    %v237 = vunpack.c.h.b16 %v168
    %v238 = vpack.c.b16 %v224, %v222
    %v239 = vpack.c.b16 %v225, %v223
    %v240 = vpack.c.b16 %v228, %v226
    %v241 = vpack.c.b16 %v229, %v227
    %v242 = vpack.c.b16 %v232, %v230
    %v243 = vpack.c.b16 %v233, %v231
    %v244 = vpack.c.b16 %v236, %v234
    %v245 = vpack.c.b16 %v237, %v235
    %vm254 = vcmask 523264
    %v255 = vsel %vm254, %v202, 0
    %257 = vmatprep.subr.bf16.mxu0 0
    %258 = vmatpush1.bf16.msra.mxu0 0
    %259 = vmatprep.subr.bf16.mxu0 0
    %260 = vmatpush1.bf16.msra.mxu0 0
    %261 = vmatprep.subr.bf16.mxu0 0
    %262 = vmatpush1.bf16.msra.mxu0 0
    %263 = vmatprep.subr.bf16.mxu0 0
    %264 = vmatpush1.bf16.msra.mxu0 0
    %265 = vmatprep.subr.bf16.mxu0 %v245
    %266 = vmatpush1.bf16.msra.mxu0 %v244
    %267 = vmatprep.subr.bf16.mxu0 %v243
    %268 = vmatpush1.bf16.msra.mxu0 %v242
    %269 = vmatprep.subr.bf16.mxu0 %v241
    %270 = vmatpush1.bf16.msra.mxu0 %v240
    %271 = vmatprep.subr.bf16.mxu0 %v239
    %272 = vmatpush1.bf16.msra.mxu0 %v238
    %273 = vmatprep.subr.bf16.mxu0 0
    %274 = vmatpush2.bf16.msra.mxu0 0
    %275 = vmatprep.subr.bf16.mxu0 0
    %276 = vmatpush2.bf16.msra.mxu0 0
    %277 = vmatprep.subr.bf16.mxu0 0
    %278 = vmatpush2.bf16.msra.mxu0 0
    %279 = vmatprep.subr.bf16.mxu0 0
    %280 = vmatpush2.bf16.msra.mxu0 0
    %281 = vmatprep.subr.bf16.mxu0 0
    %282 = vmatpush2.bf16.msra.mxu0 0
    %283 = vmatprep.subr.bf16.mxu0 0
    %284 = vmatpush2.bf16.msra.mxu0 0
    %285 = vmatprep.subr.bf16.mxu0 0
    %286 = vmatpush2.bf16.msra.mxu0 0
    %287 = vmatprep.subr.bf16.mxu0 0
    %288 = vmatpush2.bf16.msra.mxu0 0
    %289 = vmatprep.mubr.bf16.mxu0 0
    %290 = vmatmul.mubr.bf16.gmra.mxu0 %v255
    %v291 = vpop.f32.mrf.mxu0
    %v292 = vadd.f32 %v207, %v291
    %v293 = vpop.f32.mrf.mxu0
    %v294 = vadd.f32 %v211, %v293
    %v295 = vpop.f32.mrf.mxu0
    %v296 = vpop.f32.mrf.mxu0
    %297 = vdwg.mxu0
    %v298 = vadd.f32 %v292, %v134
    %v299 = vxor.u32 %v298, 2147483648
    %v300 = vmul.f32 %v299, 1.442695
    %v301 = vpow.pop %v300
    %v302 = vadd.f32 %v301, 1.0
    %v303 = vrcp.pop %v302
    %v304 = vmul.f32 1.0, %v303
    %v305 = vmul.f32 %v304, 2.0
    %v306 = vsub.f32 %v305, 1.0
    %v307 = vmul.f32 %v304, %v188
    %309 = vrot.lane.b32.xlu0 %v306, 32
    %v310 = vpop.permute.xlu0 %309
    %v312 = vmul.f32 %v304, %v310
    %314 = vrot.lane.b32.xlu0 %v312, 32
    %v315 = vpop.permute.xlu0 %314
    %v317 = vadd.f32 %v307, %v315
    %v318 = vtanh.pop %v317
    %320 = vrot.lane.b32.xlu0 %v318, 32
    %v321 = vpop.permute.xlu0 %320
    %v323 = vmul.f32 %v304, %v321
    %v324 = vpack.c.bf16 %v323, %v323
    %v325 = vxor.u32 %v294, 2147483648
    %v326 = vmul.f32 %v325, 1.442695
    %v327 = vpow.pop %v326
    %v328 = vadd.f32 %v327, 1.0
    %v329 = vrcp.pop %v328
    %v330 = vmul.f32 1.0, %v329
    %v331 = vmul.f32 %v330, 2.0
    %v332 = vsub.f32 %v331, 1.0
    %v333 = vmul.f32 %v330, 0.0
    %335 = vrot.lane.b32.xlu0 %v332, 32
    %v336 = vpop.permute.xlu0 %335
    %v338 = vmul.f32 %v330, %v336
    %340 = vrot.lane.b32.xlu0 %v338, 32
    %v341 = vpop.permute.xlu0 %340
    %v343 = vadd.f32 %v333, %v341
    %v344 = vtanh.pop %v343
    %346 = vrot.lane.b32.xlu0 %v344, 32
    %v347 = vpop.permute.xlu0 %346
    %v349 = vmul.f32 %v330, %v347
    %v350 = vpack.c.bf16 %v349, %v349
    %352 = vrot.lane.b32.xlu0 %v324, 64
    %v353 = vpop.permute.xlu0 %352
    %355 = vrot.lane.b32.xlu0 %v350, 96
    %v356 = vpop.permute.xlu0 %355
    %v359 = vsel %vm199, %v353, %v356
    %v360 = vsel %vm254, %v359, 0
    %362 = vmatprep.subr.bf16.mxu0 0
    %363 = vmatpush1.bf16.msra.mxu0 0
    %364 = vmatprep.subr.bf16.mxu0 0
    %365 = vmatpush1.bf16.msra.mxu0 0
    %366 = vmatprep.subr.bf16.mxu0 0
    %367 = vmatpush1.bf16.msra.mxu0 0
    %368 = vmatprep.subr.bf16.mxu0 0
    %369 = vmatpush1.bf16.msra.mxu0 0
    %370 = vmatprep.subr.bf16.mxu0 %v245
    %371 = vmatpush1.bf16.msra.mxu0 %v244
    %372 = vmatprep.subr.bf16.mxu0 %v243
    %373 = vmatpush1.bf16.msra.mxu0 %v242
    %374 = vmatprep.subr.bf16.mxu0 %v241
    %375 = vmatpush1.bf16.msra.mxu0 %v240
    %376 = vmatprep.subr.bf16.mxu0 %v239
    %377 = vmatpush1.bf16.msra.mxu0 %v238
    %378 = vmatprep.subr.bf16.mxu0 0
    %379 = vmatpush2.bf16.msra.mxu0 0
    %380 = vmatprep.subr.bf16.mxu0 0
    %381 = vmatpush2.bf16.msra.mxu0 0
    %382 = vmatprep.subr.bf16.mxu0 0
    %383 = vmatpush2.bf16.msra.mxu0 0
    %384 = vmatprep.subr.bf16.mxu0 0
    %385 = vmatpush2.bf16.msra.mxu0 0
    %386 = vmatprep.subr.bf16.mxu0 0
    %387 = vmatpush2.bf16.msra.mxu0 0
    %388 = vmatprep.subr.bf16.mxu0 0
    %389 = vmatpush2.bf16.msra.mxu0 0
    %390 = vmatprep.subr.bf16.mxu0 0
    %391 = vmatpush2.bf16.msra.mxu0 0
    %392 = vmatprep.subr.bf16.mxu0 0
    %393 = vmatpush2.bf16.msra.mxu0 0
    %394 = vmatprep.mubr.bf16.mxu0 0
    %395 = vmatmul.mubr.bf16.gmra.mxu0 %v360
    %v396 = vpop.f32.mrf.mxu0
    %v397 = vadd.f32 %v207, %v396
    %v398 = vpop.f32.mrf.mxu0
    %v399 = vadd.f32 %v211, %v398
    %v400 = vpop.f32.mrf.mxu0
    %v401 = vpop.f32.mrf.mxu0
    %402 = vdwg.mxu0
    %v403 = vadd.f32 %v397, %v139
    %v404 = vxor.u32 %v403, 2147483648
    %v405 = vmul.f32 %v404, 1.442695
    %v406 = vpow.pop %v405
    %v407 = vadd.f32 %v406, 1.0
    %v408 = vrcp.pop %v407
    %v409 = vmul.f32 1.0, %v408
    %v410 = vmul.f32 %v409, 2.0
    %v411 = vsub.f32 %v410, 1.0
    %v412 = vmul.f32 %v409, %v317
    %414 = vrot.lane.b32.xlu0 %v411, 32
    %v415 = vpop.permute.xlu0 %414
    %v417 = vmul.f32 %v409, %v415
    %419 = vrot.lane.b32.xlu0 %v417, 32
    %v420 = vpop.permute.xlu0 %419
    %v422 = vadd.f32 %v412, %v420
    %v423 = vtanh.pop %v422
    %425 = vrot.lane.b32.xlu0 %v423, 32
    %v426 = vpop.permute.xlu0 %425
    %v428 = vmul.f32 %v409, %v426
    %v429 = vpack.c.bf16 %v428, %v428
    %v430 = vxor.u32 %v399, 2147483648
    %v431 = vmul.f32 %v430, 1.442695
    %v432 = vpow.pop %v431
    %v433 = vadd.f32 %v432, 1.0
    %v434 = vrcp.pop %v433
    %v435 = vmul.f32 1.0, %v434
    %v436 = vmul.f32 %v435, 2.0
    %v437 = vsub.f32 %v436, 1.0
    %v438 = vmul.f32 %v435, %v343
    %440 = vrot.lane.b32.xlu0 %v437, 32
    %v441 = vpop.permute.xlu0 %440
    %v443 = vmul.f32 %v435, %v441
    %445 = vrot.lane.b32.xlu0 %v443, 32
    %v446 = vpop.permute.xlu0 %445
    %v448 = vadd.f32 %v438, %v446
    %v449 = vtanh.pop %v448
    %451 = vrot.lane.b32.xlu0 %v449, 32
    %v452 = vpop.permute.xlu0 %451
    %v454 = vmul.f32 %v435, %v452
    %v455 = vpack.c.bf16 %v454, %v454
    %457 = vrot.lane.b32.xlu0 %v429, 64
    %v458 = vpop.permute.xlu0 %457
    %460 = vrot.lane.b32.xlu0 %v455, 96
    %v461 = vpop.permute.xlu0 %460
    %v464 = vsel %vm199, %v458, %v461
    %v465 = vsel %vm254, %v464, 0
    %467 = vmatprep.subr.bf16.mxu0 0
    %468 = vmatpush1.bf16.msra.mxu0 0
    %469 = vmatprep.subr.bf16.mxu0 0
    %470 = vmatpush1.bf16.msra.mxu0 0
    %471 = vmatprep.subr.bf16.mxu0 0
    %472 = vmatpush1.bf16.msra.mxu0 0
    %473 = vmatprep.subr.bf16.mxu0 0
    %474 = vmatpush1.bf16.msra.mxu0 0
    %475 = vmatprep.subr.bf16.mxu0 %v245
    %476 = vmatpush1.bf16.msra.mxu0 %v244
    %477 = vmatprep.subr.bf16.mxu0 %v243
    %478 = vmatpush1.bf16.msra.mxu0 %v242
    %479 = vmatprep.subr.bf16.mxu0 %v241
    %480 = vmatpush1.bf16.msra.mxu0 %v240
    %481 = vmatprep.subr.bf16.mxu0 %v239
    %482 = vmatpush1.bf16.msra.mxu0 %v238
    %483 = vmatprep.subr.bf16.mxu0 0
    %484 = vmatpush2.bf16.msra.mxu0 0
    %485 = vmatprep.subr.bf16.mxu0 0
    %486 = vmatpush2.bf16.msra.mxu0 0
    %487 = vmatprep.subr.bf16.mxu0 0
    %488 = vmatpush2.bf16.msra.mxu0 0
    %489 = vmatprep.subr.bf16.mxu0 0
    %490 = vmatpush2.bf16.msra.mxu0 0
    %491 = vmatprep.subr.bf16.mxu0 0
    %492 = vmatpush2.bf16.msra.mxu0 0
    %493 = vmatprep.subr.bf16.mxu0 0
    %494 = vmatpush2.bf16.msra.mxu0 0
    %495 = vmatprep.subr.bf16.mxu0 0
    %496 = vmatpush2.bf16.msra.mxu0 0
    %497 = vmatprep.subr.bf16.mxu0 0
    %498 = vmatpush2.bf16.msra.mxu0 0
    %499 = vmatprep.mubr.bf16.mxu0 0
    %500 = vmatmul.mubr.bf16.gmra.mxu0 %v465
    %v501 = vpop.f32.mrf.mxu0
    %v502 = vadd.f32 %v207, %v501
    %v503 = vpop.f32.mrf.mxu0
    %v504 = vadd.f32 %v211, %v503
    %v505 = vpop.f32.mrf.mxu0
    %v506 = vpop.f32.mrf.mxu0
    %507 = vdwg.mxu0
    %v508 = vadd.f32 %v502, %v142
    %v509 = vxor.u32 %v508, 2147483648
    %v510 = vmul.f32 %v509, 1.442695
    %v511 = vpow.pop %v510
    %v512 = vadd.f32 %v511, 1.0
    %v513 = vrcp.pop %v512
    %v514 = vmul.f32 1.0, %v513
    %v515 = vmul.f32 %v514, 2.0
    %v516 = vsub.f32 %v515, 1.0
    %v517 = vmul.f32 %v514, %v422
    %519 = vrot.lane.b32.xlu0 %v516, 32
    %v520 = vpop.permute.xlu0 %519
    %v522 = vmul.f32 %v514, %v520
    %524 = vrot.lane.b32.xlu0 %v522, 32
    %v525 = vpop.permute.xlu0 %524
    %v527 = vadd.f32 %v517, %v525
    %v528 = vtanh.pop %v527
    %530 = vrot.lane.b32.xlu0 %v528, 32
    %v531 = vpop.permute.xlu0 %530
    %v533 = vmul.f32 %v514, %v531
    %v534 = vpack.c.bf16 %v533, %v533
    %v535 = vxor.u32 %v504, 2147483648
    %v536 = vmul.f32 %v535, 1.442695
    %v537 = vpow.pop %v536
    %v538 = vadd.f32 %v537, 1.0
    %v539 = vrcp.pop %v538
    %v540 = vmul.f32 1.0, %v539
    %v541 = vmul.f32 %v540, 2.0
    %v542 = vsub.f32 %v541, 1.0
    %v543 = vmul.f32 %v540, %v448
    %545 = vrot.lane.b32.xlu0 %v542, 32
    %v546 = vpop.permute.xlu0 %545
    %v548 = vmul.f32 %v540, %v546
    %550 = vrot.lane.b32.xlu0 %v548, 32
    %v551 = vpop.permute.xlu0 %550
    %v553 = vadd.f32 %v543, %v551
    %v554 = vtanh.pop %v553
    %556 = vrot.lane.b32.xlu0 %v554, 32
    %v557 = vpop.permute.xlu0 %556
    %v559 = vmul.f32 %v540, %v557
    %v560 = vpack.c.bf16 %v559, %v559
    %562 = vrot.lane.b32.xlu0 %v534, 64
    %v563 = vpop.permute.xlu0 %562
    %565 = vrot.lane.b32.xlu0 %v560, 96
    %v566 = vpop.permute.xlu0 %565
    %v569 = vsel %vm199, %v563, %v566
    %v570 = vsel %vm254, %v569, 0
    %572 = vmatprep.subr.bf16.mxu0 0
    %573 = vmatpush1.bf16.msra.mxu0 0
    %574 = vmatprep.subr.bf16.mxu0 0
    %575 = vmatpush1.bf16.msra.mxu0 0
    %576 = vmatprep.subr.bf16.mxu0 0
    %577 = vmatpush1.bf16.msra.mxu0 0
    %578 = vmatprep.subr.bf16.mxu0 0
    %579 = vmatpush1.bf16.msra.mxu0 0
    %580 = vmatprep.subr.bf16.mxu0 %v245
    %581 = vmatpush1.bf16.msra.mxu0 %v244
    %582 = vmatprep.subr.bf16.mxu0 %v243
    %583 = vmatpush1.bf16.msra.mxu0 %v242
    %584 = vmatprep.subr.bf16.mxu0 %v241
    %585 = vmatpush1.bf16.msra.mxu0 %v240
    %586 = vmatprep.subr.bf16.mxu0 %v239
    %587 = vmatpush1.bf16.msra.mxu0 %v238
    %588 = vmatprep.subr.bf16.mxu0 0
    %589 = vmatpush2.bf16.msra.mxu0 0
    %590 = vmatprep.subr.bf16.mxu0 0
    %591 = vmatpush2.bf16.msra.mxu0 0
    %592 = vmatprep.subr.bf16.mxu0 0
    %593 = vmatpush2.bf16.msra.mxu0 0
    %594 = vmatprep.subr.bf16.mxu0 0
    %595 = vmatpush2.bf16.msra.mxu0 0
    %596 = vmatprep.subr.bf16.mxu0 0
    %597 = vmatpush2.bf16.msra.mxu0 0
    %598 = vmatprep.subr.bf16.mxu0 0
    %599 = vmatpush2.bf16.msra.mxu0 0
    %600 = vmatprep.subr.bf16.mxu0 0
    %601 = vmatpush2.bf16.msra.mxu0 0
    %602 = vmatprep.subr.bf16.mxu0 0
    %603 = vmatpush2.bf16.msra.mxu0 0
    %604 = vmatprep.mubr.bf16.mxu0 0
    %605 = vmatmul.mubr.bf16.gmra.mxu0 %v570
    %v606 = vpop.f32.mrf.mxu0
    %v607 = vadd.f32 %v207, %v606
    %v608 = vpop.f32.mrf.mxu0
    %v609 = vadd.f32 %v211, %v608
    %v610 = vpop.f32.mrf.mxu0
    %v611 = vpop.f32.mrf.mxu0
    %612 = vdwg.mxu0
    %v613 = vadd.f32 %v607, %v147
    %v614 = vxor.u32 %v613, 2147483648
    %v615 = vmul.f32 %v614, 1.442695
    %v616 = vpow.pop %v615
    %v617 = vadd.f32 %v616, 1.0
    %v618 = vrcp.pop %v617
    %v619 = vmul.f32 1.0, %v618
    %v620 = vmul.f32 %v619, 2.0
    %v621 = vsub.f32 %v620, 1.0
    %v622 = vmul.f32 %v619, %v527
    %624 = vrot.lane.b32.xlu0 %v621, 32
    %v625 = vpop.permute.xlu0 %624
    %v627 = vmul.f32 %v619, %v625
    %629 = vrot.lane.b32.xlu0 %v627, 32
    %v630 = vpop.permute.xlu0 %629
    %v632 = vadd.f32 %v622, %v630
    %v633 = vtanh.pop %v632
    %635 = vrot.lane.b32.xlu0 %v633, 32
    %v636 = vpop.permute.xlu0 %635
    %v638 = vmul.f32 %v619, %v636
    %v639 = vpack.c.bf16 %v638, %v638
    %v640 = vxor.u32 %v609, 2147483648
    %v641 = vmul.f32 %v640, 1.442695
    %v642 = vpow.pop %v641
    %v643 = vadd.f32 %v642, 1.0
    %v644 = vrcp.pop %v643
    %v645 = vmul.f32 1.0, %v644
    %v646 = vmul.f32 %v645, 2.0
    %v647 = vsub.f32 %v646, 1.0
    %v648 = vmul.f32 %v645, %v553
    %650 = vrot.lane.b32.xlu0 %v647, 32
    %v651 = vpop.permute.xlu0 %650
    %v653 = vmul.f32 %v645, %v651
    %655 = vrot.lane.b32.xlu0 %v653, 32
    %v656 = vpop.permute.xlu0 %655
    %v658 = vadd.f32 %v648, %v656
    %v659 = vtanh.pop %v658
    %661 = vrot.lane.b32.xlu0 %v659, 32
    %v662 = vpop.permute.xlu0 %661
    %v664 = vmul.f32 %v645, %v662
    %v665 = vpack.c.bf16 %v664, %v664
    %667 = vrot.lane.b32.xlu0 %v639, 64
    %v668 = vpop.permute.xlu0 %667
    %670 = vrot.lane.b32.xlu0 %v665, 96
    %v671 = vpop.permute.xlu0 %670
    %v674 = vsel %vm199, %v668, %v671
    %v675 = vsel %vm254, %v674, 0
    %677 = vmatprep.subr.bf16.mxu0 0
    %678 = vmatpush1.bf16.msra.mxu0 0
    %679 = vmatprep.subr.bf16.mxu0 0
    %680 = vmatpush1.bf16.msra.mxu0 0
    %681 = vmatprep.subr.bf16.mxu0 0
    %682 = vmatpush1.bf16.msra.mxu0 0
    %683 = vmatprep.subr.bf16.mxu0 0
    %684 = vmatpush1.bf16.msra.mxu0 0
    %685 = vmatprep.subr.bf16.mxu0 %v245
    %686 = vmatpush1.bf16.msra.mxu0 %v244
    %687 = vmatprep.subr.bf16.mxu0 %v243
    %688 = vmatpush1.bf16.msra.mxu0 %v242
    %689 = vmatprep.subr.bf16.mxu0 %v241
    %690 = vmatpush1.bf16.msra.mxu0 %v240
    %691 = vmatprep.subr.bf16.mxu0 %v239
    %692 = vmatpush1.bf16.msra.mxu0 %v238
    %693 = vmatprep.subr.bf16.mxu0 0
    %694 = vmatpush2.bf16.msra.mxu0 0
    %695 = vmatprep.subr.bf16.mxu0 0
    %696 = vmatpush2.bf16.msra.mxu0 0
    %697 = vmatprep.subr.bf16.mxu0 0
    %698 = vmatpush2.bf16.msra.mxu0 0
    %699 = vmatprep.subr.bf16.mxu0 0
    %700 = vmatpush2.bf16.msra.mxu0 0
    %701 = vmatprep.subr.bf16.mxu0 0
    %702 = vmatpush2.bf16.msra.mxu0 0
    %703 = vmatprep.subr.bf16.mxu0 0
    %704 = vmatpush2.bf16.msra.mxu0 0
    %705 = vmatprep.subr.bf16.mxu0 0
    %706 = vmatpush2.bf16.msra.mxu0 0
    %707 = vmatprep.subr.bf16.mxu0 0
    %708 = vmatpush2.bf16.msra.mxu0 0
    %709 = vmatprep.mubr.bf16.mxu0 0
    %710 = vmatmul.mubr.bf16.gmra.mxu0 %v675
    %v711 = vpop.f32.mrf.mxu0
    %v712 = vadd.f32 %v207, %v711
    %v713 = vpop.f32.mrf.mxu0
    %v714 = vadd.f32 %v211, %v713
    %v715 = vpop.f32.mrf.mxu0
    %v716 = vpop.f32.mrf.mxu0
    %717 = vdwg.mxu0
    %v718 = vadd.f32 %v712, %v150
    %v719 = vxor.u32 %v718, 2147483648
    %v720 = vmul.f32 %v719, 1.442695
    %v721 = vpow.pop %v720
    %v722 = vadd.f32 %v721, 1.0
    %v723 = vrcp.pop %v722
    %v724 = vmul.f32 1.0, %v723
    %v725 = vmul.f32 %v724, 2.0
    %v726 = vsub.f32 %v725, 1.0
    %v727 = vmul.f32 %v724, %v632
    %729 = vrot.lane.b32.xlu0 %v726, 32
    %v730 = vpop.permute.xlu0 %729
    %v732 = vmul.f32 %v724, %v730
    %734 = vrot.lane.b32.xlu0 %v732, 32
    %v735 = vpop.permute.xlu0 %734
    %v737 = vadd.f32 %v727, %v735
    %v738 = vtanh.pop %v737
    %740 = vrot.lane.b32.xlu0 %v738, 32
    %v741 = vpop.permute.xlu0 %740
    %v743 = vmul.f32 %v724, %v741
    %v744 = vpack.c.bf16 %v743, %v743
    %v745 = vxor.u32 %v714, 2147483648
    %v746 = vmul.f32 %v745, 1.442695
    %v747 = vpow.pop %v746
    %v748 = vadd.f32 %v747, 1.0
    %v749 = vrcp.pop %v748
    %v750 = vmul.f32 1.0, %v749
    %v751 = vmul.f32 %v750, 2.0
    %v752 = vsub.f32 %v751, 1.0
    %v753 = vmul.f32 %v750, %v658
    %755 = vrot.lane.b32.xlu0 %v752, 32
    %v756 = vpop.permute.xlu0 %755
    %v758 = vmul.f32 %v750, %v756
    %760 = vrot.lane.b32.xlu0 %v758, 32
    %v761 = vpop.permute.xlu0 %760
    %v763 = vadd.f32 %v753, %v761
    %v764 = vtanh.pop %v763
    %766 = vrot.lane.b32.xlu0 %v764, 32
    %v767 = vpop.permute.xlu0 %766
    %v769 = vmul.f32 %v750, %v767
    %v770 = vpack.c.bf16 %v769, %v769
    %772 = vrot.lane.b32.xlu0 %v744, 64
    %v773 = vpop.permute.xlu0 %772
    %775 = vrot.lane.b32.xlu0 %v770, 96
    %v776 = vpop.permute.xlu0 %775
    %v779 = vsel %vm199, %v773, %v776
    %v780 = vsel %vm254, %v779, 0
    %782 = vmatprep.subr.bf16.mxu0 0
    %783 = vmatpush1.bf16.msra.mxu0 0
    %784 = vmatprep.subr.bf16.mxu0 0
    %785 = vmatpush1.bf16.msra.mxu0 0
    %786 = vmatprep.subr.bf16.mxu0 0
    %787 = vmatpush1.bf16.msra.mxu0 0
    %788 = vmatprep.subr.bf16.mxu0 0
    %789 = vmatpush1.bf16.msra.mxu0 0
    %790 = vmatprep.subr.bf16.mxu0 %v245
    %791 = vmatpush1.bf16.msra.mxu0 %v244
    %792 = vmatprep.subr.bf16.mxu0 %v243
    %793 = vmatpush1.bf16.msra.mxu0 %v242
    %794 = vmatprep.subr.bf16.mxu0 %v241
    %795 = vmatpush1.bf16.msra.mxu0 %v240
    %796 = vmatprep.subr.bf16.mxu0 %v239
    %797 = vmatpush1.bf16.msra.mxu0 %v238
    %798 = vmatprep.subr.bf16.mxu0 0
    %799 = vmatpush2.bf16.msra.mxu0 0
    %800 = vmatprep.subr.bf16.mxu0 0
    %801 = vmatpush2.bf16.msra.mxu0 0
    %802 = vmatprep.subr.bf16.mxu0 0
    %803 = vmatpush2.bf16.msra.mxu0 0
    %804 = vmatprep.subr.bf16.mxu0 0
    %805 = vmatpush2.bf16.msra.mxu0 0
    %806 = vmatprep.subr.bf16.mxu0 0
    %807 = vmatpush2.bf16.msra.mxu0 0
    %808 = vmatprep.subr.bf16.mxu0 0
    %809 = vmatpush2.bf16.msra.mxu0 0
    %810 = vmatprep.subr.bf16.mxu0 0
    %811 = vmatpush2.bf16.msra.mxu0 0
    %812 = vmatprep.subr.bf16.mxu0 0
    %813 = vmatpush2.bf16.msra.mxu0 0
    %814 = vmatprep.mubr.bf16.mxu0 0
    %815 = vmatmul.mubr.bf16.gmra.mxu0 %v780
    %v816 = vpop.f32.mrf.mxu0
    %v817 = vadd.f32 %v207, %v816
    %v818 = vpop.f32.mrf.mxu0
    %v819 = vadd.f32 %v211, %v818
    %v820 = vpop.f32.mrf.mxu0
    %v821 = vpop.f32.mrf.mxu0
    %822 = vdwg.mxu0
    %v823 = vadd.f32 %v817, %v155
    %v824 = vxor.u32 %v823, 2147483648
    %v825 = vmul.f32 %v824, 1.442695
    %v826 = vpow.pop %v825
    %v827 = vadd.f32 %v826, 1.0
    %v828 = vrcp.pop %v827
    %v829 = vmul.f32 1.0, %v828
    %v830 = vmul.f32 %v829, 2.0
    %v831 = vsub.f32 %v830, 1.0
    %v832 = vmul.f32 %v829, %v737
    %834 = vrot.lane.b32.xlu0 %v831, 32
    %v835 = vpop.permute.xlu0 %834
    %v837 = vmul.f32 %v829, %v835
    %839 = vrot.lane.b32.xlu0 %v837, 32
    %v840 = vpop.permute.xlu0 %839
    %v842 = vadd.f32 %v832, %v840
    %v843 = vtanh.pop %v842
    %845 = vrot.lane.b32.xlu0 %v843, 32
    %v846 = vpop.permute.xlu0 %845
    %v848 = vmul.f32 %v829, %v846
    %v849 = vpack.c.bf16 %v848, %v848
    %v850 = vxor.u32 %v819, 2147483648
    %v851 = vmul.f32 %v850, 1.442695
    %v852 = vpow.pop %v851
    %v853 = vadd.f32 %v852, 1.0
    %v854 = vrcp.pop %v853
    %v855 = vmul.f32 1.0, %v854
    %v856 = vmul.f32 %v855, 2.0
    %v857 = vsub.f32 %v856, 1.0
    %v858 = vmul.f32 %v855, %v763
    %860 = vrot.lane.b32.xlu0 %v857, 32
    %v861 = vpop.permute.xlu0 %860
    %v863 = vmul.f32 %v855, %v861
    %865 = vrot.lane.b32.xlu0 %v863, 32
    %v866 = vpop.permute.xlu0 %865
    %v868 = vadd.f32 %v858, %v866
    %v869 = vtanh.pop %v868
    %871 = vrot.lane.b32.xlu0 %v869, 32
    %v872 = vpop.permute.xlu0 %871
    %v874 = vmul.f32 %v855, %v872
    %v875 = vpack.c.bf16 %v874, %v874
    %877 = vrot.lane.b32.xlu0 %v849, 64
    %v878 = vpop.permute.xlu0 %877
    %880 = vrot.lane.b32.xlu0 %v875, 96
    %v881 = vpop.permute.xlu0 %880
    %v884 = vsel %vm199, %v878, %v881
    %v885 = vsel %vm254, %v884, 0
    %887 = vmatprep.subr.bf16.mxu0 0
    %888 = vmatpush1.bf16.msra.mxu0 0
    %889 = vmatprep.subr.bf16.mxu0 0
    %890 = vmatpush1.bf16.msra.mxu0 0
    %891 = vmatprep.subr.bf16.mxu0 0
    %892 = vmatpush1.bf16.msra.mxu0 0
    %893 = vmatprep.subr.bf16.mxu0 0
    %894 = vmatpush1.bf16.msra.mxu0 0
    %895 = vmatprep.subr.bf16.mxu0 %v245
    %896 = vmatpush1.bf16.msra.mxu0 %v244
    %897 = vmatprep.subr.bf16.mxu0 %v243
    %898 = vmatpush1.bf16.msra.mxu0 %v242
    %899 = vmatprep.subr.bf16.mxu0 %v241
    %900 = vmatpush1.bf16.msra.mxu0 %v240
    %901 = vmatprep.subr.bf16.mxu0 %v239
    %902 = vmatpush1.bf16.msra.mxu0 %v238
    %903 = vmatprep.subr.bf16.mxu0 0
    %904 = vmatpush2.bf16.msra.mxu0 0
    %905 = vmatprep.subr.bf16.mxu0 0
    %906 = vmatpush2.bf16.msra.mxu0 0
    %907 = vmatprep.subr.bf16.mxu0 0
    %908 = vmatpush2.bf16.msra.mxu0 0
    %909 = vmatprep.subr.bf16.mxu0 0
    %910 = vmatpush2.bf16.msra.mxu0 0
    %911 = vmatprep.subr.bf16.mxu0 0
    %912 = vmatpush2.bf16.msra.mxu0 0
    %913 = vmatprep.subr.bf16.mxu0 0
    %914 = vmatpush2.bf16.msra.mxu0 0
    %915 = vmatprep.subr.bf16.mxu0 0
    %916 = vmatpush2.bf16.msra.mxu0 0
    %917 = vmatprep.subr.bf16.mxu0 0
    %918 = vmatpush2.bf16.msra.mxu0 0
    %919 = vmatprep.mubr.bf16.mxu0 0
    %920 = vmatmul.mubr.bf16.gmra.mxu0 %v885
    %v921 = vpop.f32.mrf.mxu0
    %v922 = vadd.f32 %v207, %v921
    %v923 = vpop.f32.mrf.mxu0
    %v924 = vadd.f32 %v211, %v923
    %v925 = vpop.f32.mrf.mxu0
    %v926 = vpop.f32.mrf.mxu0
    %927 = vdwg.mxu0
    %v928 = vadd.f32 %v922, %v158
    %v929 = vxor.u32 %v928, 2147483648
    %v930 = vmul.f32 %v929, 1.442695
    %v931 = vpow.pop %v930
    %v932 = vadd.f32 %v931, 1.0
    %v933 = vrcp.pop %v932
    %v934 = vmul.f32 1.0, %v933
    %v935 = vmul.f32 %v934, 2.0
    %v936 = vsub.f32 %v935, 1.0
    %v937 = vmul.f32 %v934, %v842
    %939 = vrot.lane.b32.xlu0 %v936, 32
    %v940 = vpop.permute.xlu0 %939
    %v942 = vmul.f32 %v934, %v940
    %944 = vrot.lane.b32.xlu0 %v942, 32
    %v945 = vpop.permute.xlu0 %944
    %v947 = vadd.f32 %v937, %v945
    %v948 = vtanh.pop %v947
    %950 = vrot.lane.b32.xlu0 %v948, 32
    %v951 = vpop.permute.xlu0 %950
    %v953 = vmul.f32 %v934, %v951
    %v954 = vpack.c.bf16 %v953, %v953
    %v955 = vxor.u32 %v924, 2147483648
    %v956 = vmul.f32 %v955, 1.442695
    %v957 = vpow.pop %v956
    %v958 = vadd.f32 %v957, 1.0
    %v959 = vrcp.pop %v958
    %v960 = vmul.f32 1.0, %v959
    %v961 = vmul.f32 %v960, 2.0
    %v962 = vsub.f32 %v961, 1.0
    %v963 = vmul.f32 %v960, %v868
    %965 = vrot.lane.b32.xlu0 %v962, 32
    %v966 = vpop.permute.xlu0 %965
    %v968 = vmul.f32 %v960, %v966
    %970 = vrot.lane.b32.xlu0 %v968, 32
    %v971 = vpop.permute.xlu0 %970
    %v973 = vadd.f32 %v963, %v971
    %v974 = vtanh.pop %v973
    %976 = vrot.lane.b32.xlu0 %v974, 32
    %v977 = vpop.permute.xlu0 %976
    %v979 = vmul.f32 %v960, %v977
    %v980 = vpack.c.bf16 %v979, %v979
    %982 = vrot.lane.b32.xlu0 %v954, 64
    %v983 = vpop.permute.xlu0 %982
    %985 = vrot.lane.b32.xlu0 %v980, 96
    %v986 = vpop.permute.xlu0 %985
    %v989 = vsel %vm199, %v983, %v986
    %v990 = vsel %vm254, %v989, 0
    %992 = vmatprep.subr.bf16.mxu0 0
    %993 = vmatpush1.bf16.msra.mxu0 0
    %994 = vmatprep.subr.bf16.mxu0 0
    %995 = vmatpush1.bf16.msra.mxu0 0
    %996 = vmatprep.subr.bf16.mxu0 0
    %997 = vmatpush1.bf16.msra.mxu0 0
    %998 = vmatprep.subr.bf16.mxu0 0
    %999 = vmatpush1.bf16.msra.mxu0 0
    %1000 = vmatprep.subr.bf16.mxu0 %v245
    %1001 = vmatpush1.bf16.msra.mxu0 %v244
    %1002 = vmatprep.subr.bf16.mxu0 %v243
    %1003 = vmatpush1.bf16.msra.mxu0 %v242
    %1004 = vmatprep.subr.bf16.mxu0 %v241
    %1005 = vmatpush1.bf16.msra.mxu0 %v240
    %1006 = vmatprep.subr.bf16.mxu0 %v239
    %1007 = vmatpush1.bf16.msra.mxu0 %v238
    %1008 = vmatprep.subr.bf16.mxu0 0
    %1009 = vmatpush2.bf16.msra.mxu0 0
    %1010 = vmatprep.subr.bf16.mxu0 0
    %1011 = vmatpush2.bf16.msra.mxu0 0
    %1012 = vmatprep.subr.bf16.mxu0 0
    %1013 = vmatpush2.bf16.msra.mxu0 0
    %1014 = vmatprep.subr.bf16.mxu0 0
    %1015 = vmatpush2.bf16.msra.mxu0 0
    %1016 = vmatprep.subr.bf16.mxu0 0
    %1017 = vmatpush2.bf16.msra.mxu0 0
    %1018 = vmatprep.subr.bf16.mxu0 0
    %1019 = vmatpush2.bf16.msra.mxu0 0
    %1020 = vmatprep.subr.bf16.mxu0 0
    %1021 = vmatpush2.bf16.msra.mxu0 0
    %1022 = vmatprep.subr.bf16.mxu0 0
    %1023 = vmatpush2.bf16.msra.mxu0 0
    %1024 = vmatprep.mubr.bf16.mxu0 0
    %1025 = vmatmul.mubr.bf16.gmra.mxu0 %v990
    %v1026 = vpop.f32.mrf.mxu0
    %v1027 = vpop.f32.mrf.mxu0
    %v1028 = vadd.f32 %v211, %v1027
    %v1029 = vpop.f32.mrf.mxu0
    %v1030 = vpop.f32.mrf.mxu0
    %1031 = vdwg.mxu0
    %v1032 = vxor.u32 %v1028, 2147483648
    %v1033 = vmul.f32 %v1032, 1.442695
    %v1034 = vpow.pop %v1033
    %v1035 = vadd.f32 %v1034, 1.0
    %v1036 = vrcp.pop %v1035
    %v1037 = vmul.f32 1.0, %v1036
    %v1038 = vmul.f32 %v1037, 2.0
    %v1039 = vsub.f32 %v1038, 1.0
    %v1040 = vmul.f32 %v1037, %v973
    %1042 = vrot.lane.b32.xlu0 %v1039, 32
    %v1043 = vpop.permute.xlu0 %1042
    %v1045 = vmul.f32 %v1037, %v1043
    %1047 = vrot.lane.b32.xlu0 %v1045, 32
    %v1048 = vpop.permute.xlu0 %1047
    %v1050 = vadd.f32 %v1040, %v1048
    %v1051 = vtanh.pop %v1050
    %1053 = vrot.lane.b32.xlu0 %v1051, 32
    %v1054 = vpop.permute.xlu0 %1053
    %v1056 = vmul.f32 %v1037, %v1054
    %1058 = vrot.lane.b32.xlu0 %v953, 64
    %v1059 = vpop.permute.xlu0 %1058
    %1062 = vrot.lane.b32.xlu0 %v1056, 96
    %v1063 = vpop.permute.xlu0 %1062
    %v1065 = vsel %vm199, %v1059, %v1063
    %v1066 = vld [vmem:[%s5] sm:$0x1]
    %v1068 = vlaneseq
    %v1069 = vshrl.u32 %v1068, 7
    %v1070 = vsub.s32 0, %v1069
    %v1071 = vrot.slane %v1066, %v1070
    %v1073 = vmul.f32 %v1065, %v1071
    %v1074 = vsel %vm254, %v1073, 0.0
    %1075 = vadd.xlane.f32.xlu0 %v1074
    %v1076 = vpop.xlane.xlu0 %1075
    %v1077 = vld [vmem:[#allocation2] sm:$0x1]
    %v1079 = vlaneseq
    %v1080 = vshrl.u32 %v1079, 7
    %v1081 = vsub.s32 0, %v1080
    %v1082 = vrot.slane %v1077, %v1081
    %v1084 = vadd.f32 %v1076, %v1082
    %v1085 = vxor.u32 %v1084, 2147483648
    %v1086 = vmul.f32 %v1085, 1.442695
    %v1087 = vpow.pop %v1086
    %v1088 = vadd.f32 %v1087, 1.0
    %v1089 = vrcp.pop %v1088
    %v1090 = vmul.f32 1.0, %v1089
    %vm1091 = vcmask 7168
    %1092 = vst.msk [vmem:[%s7] sm:$0xff] %vm1091, %v1090
    // Predicated region
    $region34: #{tpu_custom_call.1} parent=1 // pred_check
      _
    $region35: #{tpu_custom_call.1} parent=1 // pred_check_branch
      %1094 = sbr.rel (0) target = $region37
    $region36: #{tpu_custom_call.1} parent=1 // pred_region
      _
    $region37: #{tpu_custom_call.1} parent=1 // pred_fallthru
      _
    // Predicated region
    $region38: #{tpu_custom_call.1} parent=1 // pred_check
      _
    $region39: #{tpu_custom_call.1} parent=1 // pred_check_branch
      %1096 = sbr.rel (0) target = $region41
    $region40: #{tpu_custom_call.1} parent=1 // pred_region
      _
    $region41: #{tpu_custom_call.1} parent=1 // pred_fallthru
      _
    %1097 = vsyncpa [#allocation4], 1

</llo_original>
